<compile_context>
chip_gen: v7x
topology: tpu7x:2x2x1
jax: 0.10.0
libtpu: 0.0.40
codegen_flags: <defaults>
</compile_context>

<pallas_src>
import jax
import jax.numpy as jnp
import numpy as np
from jax.experimental import pallas as pl
from jax.experimental.pallas import tpu as pltpu


def make_rnn_kernel(num_layers: int, seq_len: int, batch: int):
    """Build a Pallas kernel closed over the static layer/seq/batch counts."""
    L, S, B = num_layers, seq_len, batch

    def kernel(xflat_ref, h0_ref, *args):
        # args layout (all VMEM refs):
        #   inputs : [w_ih_0T, w_hh_0T, b_0, ..., w_ih_{L-1}T, w_hh_{L-1}T,
        #             b_{L-1}, w_outT, b_out]
        #   outputs: [out_ref, hn_ref]
        w_ih_refs = args[0:3 * L:3]          # layer 0: (Din_pad, H); l>0: (H, H)
        w_hh_refs = args[1:3 * L:3]          # (H, H)
        bias_refs = args[2:3 * L:3]          # (1, H)  (= b_ih + b_hh)
        w_out_ref = args[3 * L + 0]          # (H, O)
        b_out_ref = args[3 * L + 1]          # (1, O)
        out_ref = args[3 * L + 2]            # (B, O)
        hn_ref = args[3 * L + 3]             # (L, B, H)

        # Hoist all weight/bias loads and the bias broadcasts out of the loop.
        w_ih = [w_ih_refs[l][...] for l in range(L)]
        w_hh = [w_hh_refs[l][...] for l in range(L)]
        bias1 = [bias_refs[l][...] for l in range(L)]                 # (1, H)
        bias_b = [jnp.broadcast_to(bias1[l], (B, B * 0 + bias1[l].shape[1]))
                  for l in range(L)]                                  # (B, H)

        # Layer-0 input projection hoisted out of the recurrence:
        # (S*B, Din_pad) @ (Din_pad, H) + b0 -> (S*B, H), time-major rows.
        xp0 = jnp.dot(xflat_ref[...], w_ih[0],
                      preferred_element_type=jnp.float32) + bias1[0]

        # Current hidden state per layer.
        h = [h0_ref[l] for l in range(L)]                             # each (B, H)

        # Wavefront over the (layer, time) grid: diagonal d covers cells
        # (l, t = d - l).  Each cell needs h[l] from diagonal d-1 (its own
        # recurrence) and h[l-1] from diagonal d-1 (its input), so all active
        # layers at a diagonal are independent -> their recurrent matmuls and
        # tanh ops overlap in the MXU/EUP pipes.
        for d in range(S + L - 1):
            new_h = {}
            for l in range(L):
                t = d - l
                if 0 <= t < S:
                    if l == 0:
                        pre = xp0[t * B:(t + 1) * B, :]               # static slice
                    else:
                        # Per-step input projection for deeper layers; depends
                        # only on h[l-1] from the previous diagonal, so it sits
                        # off layer l's serial h-chain.
                        pre = jnp.dot(h[l - 1], w_ih[l],
                                      preferred_element_type=jnp.float32) + bias_b[l]
                    new_h[l] = jnp.tanh(
                        pre + jnp.dot(h[l], w_hh[l],
                                      preferred_element_type=jnp.float32))
            for l, v in new_h.items():
                h[l] = v

        # Final hidden of every layer.
        for l in range(L):
            hn_ref[l] = h[l]

        # Linear head on the last layer's final hidden (== rnn_out[:, -1, :]).
        out_ref[...] = (
            jnp.dot(h[L - 1], w_out_ref[...], preferred_element_type=jnp.float32)
            + b_out_ref[...]
        )

    return kernel


def prepare_params(params, input_pad: int = 128):
    """One-time weight prep (keep OUT of the per-call path).

    Pre-transposes W_ih/W_hh/W_out, fuses b_ih + b_hh, and zero-pads the
    layer-0 input dimension up to `input_pad` (100 -> 128) for an aligned,
    unmasked MXU K dimension.
    """
    L = len(params["w_ih"])
    H = params["w_hh"][0].shape[0]
    O = params["w_out"].shape[0]
    layers = []
    for l in range(L):
        w_ihT = jnp.transpose(params["w_ih"][l])            # (Din_l, H)
        if l == 0 and w_ihT.shape[0] < input_pad:
            w_ihT = jnp.pad(w_ihT, ((0, input_pad - w_ihT.shape[0]), (0, 0)))
        w_hhT = jnp.transpose(params["w_hh"][l])             # (H, H)
        b = (params["b_ih"][l] + params["b_hh"][l]).reshape(1, H)
        layers.append((w_ihT, w_hhT, b))
    return {
        "layers": layers,
        "w_outT": jnp.transpose(params["w_out"]),            # (H, O)
        "b_out": params["b_out"].reshape(1, O),
    }


def clt_rnn_forward(x, h0, prepped):
    """Pallas-backed equivalent of CLTModelRNN.forward(input, hidden).

    x: (B, S, Din) batch-first (same as PyTorch);  h0: (L, B, H).
    Returns (output (B, O), hidden (L, B, H)).
    """
    B, S, Din = x.shape
    L, _, H = h0.shape
    O = prepped["w_outT"].shape[1]
    din_pad = prepped["layers"][0][0].shape[0]

    # Time-major, flattened, zero-padded input: (S*B, Din_pad).  Tiny fused
    # XLA ops; everything downstream is a single pallas_call.
    xt = jnp.transpose(x, (1, 0, 2)).reshape(S * B, Din)
    if din_pad > Din:
        xt = jnp.pad(xt, ((0, 0), (0, din_pad - Din)))

    inputs = [xt, h0]
    for (w_ihT, w_hhT, b) in prepped["layers"]:
        inputs += [w_ihT, w_hhT, b]
    inputs += [prepped["w_outT"], prepped["b_out"]]

    vmem = pl.BlockSpec(memory_space=pltpu.MemorySpace.VMEM)
    out_shapes = (
        jax.ShapeDtypeStruct((B, O), jnp.float32),     # output
        jax.ShapeDtypeStruct((L, B, H), jnp.float32),  # final hidden (all layers)
    )

    return pl.pallas_call(
        make_rnn_kernel(L, S, B),
        out_shape=out_shapes,
        in_specs=[vmem] * len(inputs),
        out_specs=(vmem, vmem),
    )(*inputs)


def reference_forward(x, h0, params):
    """Pure-JAX reference (mirrors torch nn.RNN + Linear)."""
    L = h0.shape[0]
    layer_in = x
    hn = []
    for l in range(L):
        w_ih = params["w_ih"][l]
        w_hh = params["w_hh"][l]
        b = params["b_ih"][l] + params["b_hh"][l]
        h = h0[l]
        outs = []
        for t in range(layer_in.shape[1]):
            h = jnp.tanh(layer_in[:, t, :] @ w_ih.T + h @ w_hh.T + b)
            outs.append(h)
        hn.append(h)
        layer_in = jnp.stack(outs, axis=1)
    out = layer_in[:, -1, :] @ params["w_out"].T + params["b_out"]
    return out, jnp.stack(hn, axis=0)


def init_params(key, input_size, hidden_size, output_size, num_layers):
    """Deterministic init, same shapes as nn.RNN / nn.Linear (U[-1/sqrt(H), 1/sqrt(H)])."""
    bound = 1.0 / np.sqrt(hidden_size)
    params = {"w_ih": [], "w_hh": [], "b_ih": [], "b_hh": []}
    for l in range(num_layers):
        d_in = input_size if l == 0 else hidden_size
        key, k1, k2, k3, k4 = jax.random.split(key, 5)
        params["w_ih"].append(
            jax.random.uniform(k1, (hidden_size, d_in), jnp.float32, -bound, bound))
        params["w_hh"].append(
            jax.random.uniform(k2, (hidden_size, hidden_size), jnp.float32, -bound, bound))
        params["b_ih"].append(
            jax.random.uniform(k3, (hidden_size,), jnp.float32, -bound, bound))
        params["b_hh"].append(
            jax.random.uniform(k4, (hidden_size,), jnp.float32, -bound, bound))
    key, k5, k6 = jax.random.split(key, 3)
    params["w_out"] = jax.random.uniform(
        k5, (output_size, hidden_size), jnp.float32, -bound, bound)
    params["b_out"] = jax.random.uniform(
        k6, (output_size,), jnp.float32, -bound, bound)
    return params


if __name__ == "__main__":
    # Small shapes consistent with the module: batch=2, seq=8, input_size=100
    # (nn.RNN default in initialise), hidden=32, output=16, num_layers=2.
    batch, seq, input_size = 2, 8, 100
    hidden_size, output_size, num_layers = 32, 16, 2

    key = jax.random.PRNGKey(0)
    key, kx = jax.random.split(key)
    x = jax.random.normal(kx, (batch, seq, input_size), jnp.float32)
    # initHidden(): zeros of shape (num_layers, batch, hidden)
    h0 = jnp.zeros((num_layers, batch, hidden_size), jnp.float32)

    params = init_params(key, input_size, hidden_size, output_size, num_layers)

    # One-time weight preparation; the per-call graph is only the pallas_call
    # (plus a tiny transpose/pad of x), all under a single jit.
    prepped = prepare_params(params)
    forward = jax.jit(clt_rnn_forward)

    out, hn = forward(x, h0, prepped)
    out = jax.block_until_ready(out)
    hn = jax.block_until_ready(hn)

    ref_out, ref_hn = reference_forward(x, h0, params)
    assert out.shape == (batch, output_size)
    assert hn.shape == (num_layers, batch, hidden_size)
    np.testing.assert_allclose(np.asarray(out), np.asarray(ref_out), atol=1e-5, rtol=1e-5)
    np.testing.assert_allclose(np.asarray(hn), np.asarray(ref_hn), atol=1e-5, rtol=1e-5)

    print("KERNEL_OK")
</pallas_src>

<mosaic_0001>
module attributes {stable_mosaic.version = 11 : i64} {
  func.func @kernel(%arg0: memref<16x128xf32, #tpu.memory_space<vmem>>, %arg1: memref<2x2x32xf32, #tpu.memory_space<vmem>>, %arg2: memref<128x32xf32, #tpu.memory_space<vmem>>, %arg3: memref<32x32xf32, #tpu.memory_space<vmem>>, %arg4: memref<1x32xf32, #tpu.memory_space<vmem>>, %arg5: memref<32x32xf32, #tpu.memory_space<vmem>>, %arg6: memref<32x32xf32, #tpu.memory_space<vmem>>, %arg7: memref<1x32xf32, #tpu.memory_space<vmem>>, %arg8: memref<32x16xf32, #tpu.memory_space<vmem>>, %arg9: memref<1x16xf32, #tpu.memory_space<vmem>>, %arg10: memref<2x16xf32, #tpu.memory_space<vmem>>, %arg11: memref<2x2x32xf32, #tpu.memory_space<vmem>>) attributes {dimension_semantics = [], scalar_prefetch = 0 : i64, scratch_operands = 0 : i64, tpu.core_type = #tpu.core_type<tc>} {
    %c0 = arith.constant 0 : index
    %c0_0 = arith.constant 0 : index
    %0 = vector.load %arg2[%c0, %c0_0] : memref<128x32xf32, #tpu.memory_space<vmem>>, vector<128x32xf32>
    %c0_1 = arith.constant 0 : index
    %c0_2 = arith.constant 0 : index
    %1 = vector.load %arg5[%c0_1, %c0_2] : memref<32x32xf32, #tpu.memory_space<vmem>>, vector<32x32xf32>
    %c0_3 = arith.constant 0 : index
    %c0_4 = arith.constant 0 : index
    %2 = vector.load %arg3[%c0_3, %c0_4] : memref<32x32xf32, #tpu.memory_space<vmem>>, vector<32x32xf32>
    %c0_5 = arith.constant 0 : index
    %c0_6 = arith.constant 0 : index
    %3 = vector.load %arg6[%c0_5, %c0_6] : memref<32x32xf32, #tpu.memory_space<vmem>>, vector<32x32xf32>
    %c0_7 = arith.constant 0 : index
    %c0_8 = arith.constant 0 : index
    %4 = vector.load %arg4[%c0_7, %c0_8] : memref<1x32xf32, #tpu.memory_space<vmem>>, vector<1x32xf32>
    %c0_9 = arith.constant 0 : index
    %c0_10 = arith.constant 0 : index
    %5 = vector.load %arg7[%c0_9, %c0_10] : memref<1x32xf32, #tpu.memory_space<vmem>>, vector<1x32xf32>
    %6 = vector.shape_cast %5 : vector<1x32xf32> to vector<1x32xf32>
    %7 = vector.broadcast %6 : vector<1x32xf32> to vector<2x32xf32>
    %c0_11 = arith.constant 0 : index
    %c0_12 = arith.constant 0 : index
    %8 = vector.load %arg0[%c0_11, %c0_12] : memref<16x128xf32, #tpu.memory_space<vmem>>, vector<16x128xf32>
    %cst = arith.constant dense<0.000000e+00> : vector<16x32xf32>
    %9 = tpu.matmul %8, %0, %cst {dimension_numbers = #tpu.dot_dimension_numbers<[1], [0], [0], [1], [0, 0, 1, 1], [], []>} : vector<16x128xf32>, vector<128x32xf32>, vector<16x32xf32> -> vector<16x32xf32>
    %10 = vector.broadcast %4 : vector<1x32xf32> to vector<16x32xf32>
    %11 = arith.addf %9, %10 : vector<16x32xf32>
    %c0_13 = arith.constant 0 : index
    %c0_14 = arith.constant 0 : index
    %c0_15 = arith.constant 0 : index
    %12 = vector.load %arg1[%c0_13, %c0_14, %c0_15] : memref<2x2x32xf32, #tpu.memory_space<vmem>>, vector<1x2x32xf32>
    %13 = vector.shape_cast %12 : vector<1x2x32xf32> to vector<2x32xf32>
    %c1 = arith.constant 1 : index
    %c0_16 = arith.constant 0 : index
    %c0_17 = arith.constant 0 : index
    %14 = vector.load %arg1[%c1, %c0_16, %c0_17] : memref<2x2x32xf32, #tpu.memory_space<vmem>>, vector<1x2x32xf32>
    %15 = vector.shape_cast %14 : vector<1x2x32xf32> to vector<2x32xf32>
    %16 = vector.extract_strided_slice %11 {offsets = [0, 0], sizes = [2, 32], strides = [1, 1]} : vector<16x32xf32> to vector<2x32xf32>
    %cst_18 = arith.constant dense<0.000000e+00> : vector<2x32xf32>
    %17 = tpu.matmul %13, %2, %cst_18 {dimension_numbers = #tpu.dot_dimension_numbers<[1], [0], [0], [1], [0, 0, 1, 1], [], []>} : vector<2x32xf32>, vector<32x32xf32>, vector<2x32xf32> -> vector<2x32xf32>
    %18 = arith.addf %16, %17 : vector<2x32xf32>
    %19 = math.tanh %18 : vector<2x32xf32>
    %20 = vector.extract_strided_slice %11 {offsets = [2, 0], sizes = [2, 32], strides = [1, 1]} : vector<16x32xf32> to vector<2x32xf32>
    %cst_19 = arith.constant dense<0.000000e+00> : vector<2x32xf32>
    %21 = tpu.matmul %19, %2, %cst_19 {dimension_numbers = #tpu.dot_dimension_numbers<[1], [0], [0], [1], [0, 0, 1, 1], [], []>} : vector<2x32xf32>, vector<32x32xf32>, vector<2x32xf32> -> vector<2x32xf32>
    %22 = arith.addf %20, %21 : vector<2x32xf32>
    %23 = math.tanh %22 : vector<2x32xf32>
    %cst_20 = arith.constant dense<0.000000e+00> : vector<2x32xf32>
    %24 = tpu.matmul %19, %1, %cst_20 {dimension_numbers = #tpu.dot_dimension_numbers<[1], [0], [0], [1], [0, 0, 1, 1], [], []>} : vector<2x32xf32>, vector<32x32xf32>, vector<2x32xf32> -> vector<2x32xf32>
    %25 = arith.addf %24, %7 : vector<2x32xf32>
    %cst_21 = arith.constant dense<0.000000e+00> : vector<2x32xf32>
    %26 = tpu.matmul %15, %3, %cst_21 {dimension_numbers = #tpu.dot_dimension_numbers<[1], [0], [0], [1], [0, 0, 1, 1], [], []>} : vector<2x32xf32>, vector<32x32xf32>, vector<2x32xf32> -> vector<2x32xf32>
    %27 = arith.addf %25, %26 : vector<2x32xf32>
    %28 = math.tanh %27 : vector<2x32xf32>
    %29 = vector.extract_strided_slice %11 {offsets = [4, 0], sizes = [2, 32], strides = [1, 1]} : vector<16x32xf32> to vector<2x32xf32>
    %cst_22 = arith.constant dense<0.000000e+00> : vector<2x32xf32>
    %30 = tpu.matmul %23, %2, %cst_22 {dimension_numbers = #tpu.dot_dimension_numbers<[1], [0], [0], [1], [0, 0, 1, 1], [], []>} : vector<2x32xf32>, vector<32x32xf32>, vector<2x32xf32> -> vector<2x32xf32>
    %31 = arith.addf %29, %30 : vector<2x32xf32>
    %32 = math.tanh %31 : vector<2x32xf32>
    %cst_23 = arith.constant dense<0.000000e+00> : vector<2x32xf32>
    %33 = tpu.matmul %23, %1, %cst_23 {dimension_numbers = #tpu.dot_dimension_numbers<[1], [0], [0], [1], [0, 0, 1, 1], [], []>} : vector<2x32xf32>, vector<32x32xf32>, vector<2x32xf32> -> vector<2x32xf32>
    %34 = arith.addf %33, %7 : vector<2x32xf32>
    %cst_24 = arith.constant dense<0.000000e+00> : vector<2x32xf32>
    %35 = tpu.matmul %28, %3, %cst_24 {dimension_numbers = #tpu.dot_dimension_numbers<[1], [0], [0], [1], [0, 0, 1, 1], [], []>} : vector<2x32xf32>, vector<32x32xf32>, vector<2x32xf32> -> vector<2x32xf32>
    %36 = arith.addf %34, %35 : vector<2x32xf32>
    %37 = math.tanh %36 : vector<2x32xf32>
    %38 = vector.extract_strided_slice %11 {offsets = [6, 0], sizes = [2, 32], strides = [1, 1]} : vector<16x32xf32> to vector<2x32xf32>
    %cst_25 = arith.constant dense<0.000000e+00> : vector<2x32xf32>
    %39 = tpu.matmul %32, %2, %cst_25 {dimension_numbers = #tpu.dot_dimension_numbers<[1], [0], [0], [1], [0, 0, 1, 1], [], []>} : vector<2x32xf32>, vector<32x32xf32>, vector<2x32xf32> -> vector<2x32xf32>
    %40 = arith.addf %38, %39 : vector<2x32xf32>
    %41 = math.tanh %40 : vector<2x32xf32>
    %cst_26 = arith.constant dense<0.000000e+00> : vector<2x32xf32>
    %42 = tpu.matmul %32, %1, %cst_26 {dimension_numbers = #tpu.dot_dimension_numbers<[1], [0], [0], [1], [0, 0, 1, 1], [], []>} : vector<2x32xf32>, vector<32x32xf32>, vector<2x32xf32> -> vector<2x32xf32>
    %43 = arith.addf %42, %7 : vector<2x32xf32>
    %cst_27 = arith.constant dense<0.000000e+00> : vector<2x32xf32>
    %44 = tpu.matmul %37, %3, %cst_27 {dimension_numbers = #tpu.dot_dimension_numbers<[1], [0], [0], [1], [0, 0, 1, 1], [], []>} : vector<2x32xf32>, vector<32x32xf32>, vector<2x32xf32> -> vector<2x32xf32>
    %45 = arith.addf %43, %44 : vector<2x32xf32>
    %46 = math.tanh %45 : vector<2x32xf32>
    %47 = vector.extract_strided_slice %11 {offsets = [8, 0], sizes = [2, 32], strides = [1, 1]} : vector<16x32xf32> to vector<2x32xf32>
    %cst_28 = arith.constant dense<0.000000e+00> : vector<2x32xf32>
    %48 = tpu.matmul %41, %2, %cst_28 {dimension_numbers = #tpu.dot_dimension_numbers<[1], [0], [0], [1], [0, 0, 1, 1], [], []>} : vector<2x32xf32>, vector<32x32xf32>, vector<2x32xf32> -> vector<2x32xf32>
    %49 = arith.addf %47, %48 : vector<2x32xf32>
    %50 = math.tanh %49 : vector<2x32xf32>
    %cst_29 = arith.constant dense<0.000000e+00> : vector<2x32xf32>
    %51 = tpu.matmul %41, %1, %cst_29 {dimension_numbers = #tpu.dot_dimension_numbers<[1], [0], [0], [1], [0, 0, 1, 1], [], []>} : vector<2x32xf32>, vector<32x32xf32>, vector<2x32xf32> -> vector<2x32xf32>
    %52 = arith.addf %51, %7 : vector<2x32xf32>
    %cst_30 = arith.constant dense<0.000000e+00> : vector<2x32xf32>
    %53 = tpu.matmul %46, %3, %cst_30 {dimension_numbers = #tpu.dot_dimension_numbers<[1], [0], [0], [1], [0, 0, 1, 1], [], []>} : vector<2x32xf32>, vector<32x32xf32>, vector<2x32xf32> -> vector<2x32xf32>
    %54 = arith.addf %52, %53 : vector<2x32xf32>
    %55 = math.tanh %54 : vector<2x32xf32>
    %56 = vector.extract_strided_slice %11 {offsets = [10, 0], sizes = [2, 32], strides = [1, 1]} : vector<16x32xf32> to vector<2x32xf32>
    %cst_31 = arith.constant dense<0.000000e+00> : vector<2x32xf32>
    %57 = tpu.matmul %50, %2, %cst_31 {dimension_numbers = #tpu.dot_dimension_numbers<[1], [0], [0], [1], [0, 0, 1, 1], [], []>} : vector<2x32xf32>, vector<32x32xf32>, vector<2x32xf32> -> vector<2x32xf32>
    %58 = arith.addf %56, %57 : vector<2x32xf32>
    %59 = math.tanh %58 : vector<2x32xf32>
    %cst_32 = arith.constant dense<0.000000e+00> : vector<2x32xf32>
    %60 = tpu.matmul %50, %1, %cst_32 {dimension_numbers = #tpu.dot_dimension_numbers<[1], [0], [0], [1], [0, 0, 1, 1], [], []>} : vector<2x32xf32>, vector<32x32xf32>, vector<2x32xf32> -> vector<2x32xf32>
    %61 = arith.addf %60, %7 : vector<2x32xf32>
    %cst_33 = arith.constant dense<0.000000e+00> : vector<2x32xf32>
    %62 = tpu.matmul %55, %3, %cst_33 {dimension_numbers = #tpu.dot_dimension_numbers<[1], [0], [0], [1], [0, 0, 1, 1], [], []>} : vector<2x32xf32>, vector<32x32xf32>, vector<2x32xf32> -> vector<2x32xf32>
    %63 = arith.addf %61, %62 : vector<2x32xf32>
    %64 = math.tanh %63 : vector<2x32xf32>
    %65 = vector.extract_strided_slice %11 {offsets = [12, 0], sizes = [2, 32], strides = [1, 1]} : vector<16x32xf32> to vector<2x32xf32>
    %cst_34 = arith.constant dense<0.000000e+00> : vector<2x32xf32>
    %66 = tpu.matmul %59, %2, %cst_34 {dimension_numbers = #tpu.dot_dimension_numbers<[1], [0], [0], [1], [0, 0, 1, 1], [], []>} : vector<2x32xf32>, vector<32x32xf32>, vector<2x32xf32> -> vector<2x32xf32>
    %67 = arith.addf %65, %66 : vector<2x32xf32>
    %68 = math.tanh %67 : vector<2x32xf32>
    %cst_35 = arith.constant dense<0.000000e+00> : vector<2x32xf32>
    %69 = tpu.matmul %59, %1, %cst_35 {dimension_numbers = #tpu.dot_dimension_numbers<[1], [0], [0], [1], [0, 0, 1, 1], [], []>} : vector<2x32xf32>, vector<32x32xf32>, vector<2x32xf32> -> vector<2x32xf32>
    %70 = arith.addf %69, %7 : vector<2x32xf32>
    %cst_36 = arith.constant dense<0.000000e+00> : vector<2x32xf32>
    %71 = tpu.matmul %64, %3, %cst_36 {dimension_numbers = #tpu.dot_dimension_numbers<[1], [0], [0], [1], [0, 0, 1, 1], [], []>} : vector<2x32xf32>, vector<32x32xf32>, vector<2x32xf32> -> vector<2x32xf32>
    %72 = arith.addf %70, %71 : vector<2x32xf32>
    %73 = math.tanh %72 : vector<2x32xf32>
    %74 = vector.extract_strided_slice %11 {offsets = [14, 0], sizes = [2, 32], strides = [1, 1]} : vector<16x32xf32> to vector<2x32xf32>
    %cst_37 = arith.constant dense<0.000000e+00> : vector<2x32xf32>
    %75 = tpu.matmul %68, %2, %cst_37 {dimension_numbers = #tpu.dot_dimension_numbers<[1], [0], [0], [1], [0, 0, 1, 1], [], []>} : vector<2x32xf32>, vector<32x32xf32>, vector<2x32xf32> -> vector<2x32xf32>
    %76 = arith.addf %74, %75 : vector<2x32xf32>
    %77 = math.tanh %76 : vector<2x32xf32>
    %cst_38 = arith.constant dense<0.000000e+00> : vector<2x32xf32>
    %78 = tpu.matmul %68, %1, %cst_38 {dimension_numbers = #tpu.dot_dimension_numbers<[1], [0], [0], [1], [0, 0, 1, 1], [], []>} : vector<2x32xf32>, vector<32x32xf32>, vector<2x32xf32> -> vector<2x32xf32>
    %79 = arith.addf %78, %7 : vector<2x32xf32>
    %cst_39 = arith.constant dense<0.000000e+00> : vector<2x32xf32>
    %80 = tpu.matmul %73, %3, %cst_39 {dimension_numbers = #tpu.dot_dimension_numbers<[1], [0], [0], [1], [0, 0, 1, 1], [], []>} : vector<2x32xf32>, vector<32x32xf32>, vector<2x32xf32> -> vector<2x32xf32>
    %81 = arith.addf %79, %80 : vector<2x32xf32>
    %82 = math.tanh %81 : vector<2x32xf32>
    %cst_40 = arith.constant dense<0.000000e+00> : vector<2x32xf32>
    %83 = tpu.matmul %77, %1, %cst_40 {dimension_numbers = #tpu.dot_dimension_numbers<[1], [0], [0], [1], [0, 0, 1, 1], [], []>} : vector<2x32xf32>, vector<32x32xf32>, vector<2x32xf32> -> vector<2x32xf32>
    %84 = arith.addf %83, %7 : vector<2x32xf32>
    %cst_41 = arith.constant dense<0.000000e+00> : vector<2x32xf32>
    %85 = tpu.matmul %82, %3, %cst_41 {dimension_numbers = #tpu.dot_dimension_numbers<[1], [0], [0], [1], [0, 0, 1, 1], [], []>} : vector<2x32xf32>, vector<32x32xf32>, vector<2x32xf32> -> vector<2x32xf32>
    %86 = arith.addf %84, %85 : vector<2x32xf32>
    %87 = math.tanh %86 : vector<2x32xf32>
    %c0_42 = arith.constant 0 : index
    %c0_43 = arith.constant 0 : index
    %c0_44 = arith.constant 0 : index
    %88 = vector.load %arg11[%c0_42, %c0_43, %c0_44] : memref<2x2x32xf32, #tpu.memory_space<vmem>>, vector<1x2x32xf32>
    %89 = vector.shape_cast %88 : vector<1x2x32xf32> to vector<2x32xf32>
    %90 = vector.shape_cast %77 : vector<2x32xf32> to vector<1x2x32xf32>
    tpu.vector_store %arg11[%c0_42, %c0_43, %c0_44], %90 {strides = array<i32>} : memref<2x2x32xf32, #tpu.memory_space<vmem>>, vector<1x2x32xf32>,
    %c1_45 = arith.constant 1 : index
    %c0_46 = arith.constant 0 : index
    %c0_47 = arith.constant 0 : index
    %91 = vector.load %arg11[%c1_45, %c0_46, %c0_47] : memref<2x2x32xf32, #tpu.memory_space<vmem>>, vector<1x2x32xf32>
    %92 = vector.shape_cast %91 : vector<1x2x32xf32> to vector<2x32xf32>
    %93 = vector.shape_cast %87 : vector<2x32xf32> to vector<1x2x32xf32>
    tpu.vector_store %arg11[%c1_45, %c0_46, %c0_47], %93 {strides = array<i32>} : memref<2x2x32xf32, #tpu.memory_space<vmem>>, vector<1x2x32xf32>,
    %c0_48 = arith.constant 0 : index
    %c0_49 = arith.constant 0 : index
    %94 = vector.load %arg8[%c0_48, %c0_49] : memref<32x16xf32, #tpu.memory_space<vmem>>, vector<32x16xf32>
    %cst_50 = arith.constant dense<0.000000e+00> : vector<2x16xf32>
    %95 = tpu.matmul %87, %94, %cst_50 {dimension_numbers = #tpu.dot_dimension_numbers<[1], [0], [0], [1], [0, 0, 1, 1], [], []>} : vector<2x32xf32>, vector<32x16xf32>, vector<2x16xf32> -> vector<2x16xf32>
    %c0_51 = arith.constant 0 : index
    %c0_52 = arith.constant 0 : index
    %96 = vector.load %arg9[%c0_51, %c0_52] : memref<1x16xf32, #tpu.memory_space<vmem>>, vector<1x16xf32>
    %97 = vector.broadcast %96 : vector<1x16xf32> to vector<2x16xf32>
    %98 = arith.addf %95, %97 : vector<2x16xf32>
    %c0_53 = arith.constant 0 : index
    %c0_54 = arith.constant 0 : index
    %99 = vector.load %arg10[%c0_53, %c0_54] : memref<2x16xf32, #tpu.memory_space<vmem>>, vector<2x16xf32>
    tpu.vector_store %arg10[%c0_53, %c0_54], %98 {strides = array<i32>} : memref<2x16xf32, #tpu.memory_space<vmem>>, vector<2x16xf32>,
    return
  }
}

</mosaic_0001>

<llo_original>
// kernel: clt_rnn_forward.1
$region0: #{clt_rnn_forward.1}
  #allocation0 [shape = 'u32[]', space=smem, size = 0x4, offset = 0x4, fixed_abs, tag = 'smem constant byte address 0x4 - core index']
  #allocation1 [shape = 'u32[144,128]{1,0:T(1,128)}', space=vmem, size = 0x12000, scoped, tag = 'internal scratch']
  %s0 = inlined_call_operand.vmem [shape: f32[16,128], index: 0, kind: input, shape index: {}]
  %s1 = inlined_call_operand.vmem [shape: f32[2,2,32], index: 1, kind: input, shape index: {}]
  %s2 = inlined_call_operand.vmem [shape: f32[128,32], index: 2, kind: input, shape index: {}]
  %s3 = inlined_call_operand.vmem [shape: f32[32,32], index: 3, kind: input, shape index: {}]
  %s4 = inlined_call_operand.vmem [shape: f32[1,32], index: 4, kind: input, shape index: {}]
  %s5 = inlined_call_operand.vmem [shape: f32[32,32], index: 5, kind: input, shape index: {}]
  %s6 = inlined_call_operand.vmem [shape: f32[32,32], index: 6, kind: input, shape index: {}]
  %s7 = inlined_call_operand.vmem [shape: f32[1,32], index: 7, kind: input, shape index: {}]
  %s8 = inlined_call_operand.vmem [shape: f32[32,16], index: 8, kind: input, shape index: {}]
  %s9 = inlined_call_operand.vmem [shape: f32[1,16], index: 9, kind: input, shape index: {}]
  %s10 = inlined_call_operand.hbm [shape: f32[2,16], index: 10, kind: output, shape index: {0}]
  %s11 = inlined_call_operand.hbm [shape: f32[2,2,32], index: 11, kind: output, shape index: {1}]
  %12 = xla_tuple %s10, %s11
  %s13 = sld [smem:[#allocation0]]
  $region58: #{clt_rnn_forward.1} parent=0
    _
  %s15 = ssub.s32 1, %s13
  %s16 = scalar_select 0, %s15, %s13
  $region1: #{clt_rnn_forward.1} parent=0
    #allocation2 [shape = 'u8[1024]{0}', space=vmem, size = 0x400, scoped, tag = 'output window, operand 0, single buffered']
    #allocation3 [shape = 's32[1]{0}', space=sflag, size = 0x4, scoped, tag = 'scoped memory for clt_rnn_forward.1']
    #allocation4 [shape = 'u8[2048]{0}', space=vmem, size = 0x800, scoped, tag = 'output window, operand 1, single buffered']
    #allocation5 [shape = 's32[1]{0}', space=sflag, size = 0x4, scoped, tag = 'scoped memory for clt_rnn_forward.1']
    %17 = vsyncpa [#allocation3], 0
    %18 = vsyncpa [#allocation5], 0
    // Predicated region
    $region2: #{clt_rnn_forward.1} parent=1 // pred_check
      _
    $region3: #{clt_rnn_forward.1} parent=1 // pred_check_branch
      %20 = sbr.rel (0) target = $region5
    $region4: #{clt_rnn_forward.1} parent=1 // pred_region
      _
    $region5: #{clt_rnn_forward.1} parent=1 // pred_fallthru
      _
    // Predicated region
    $region6: #{clt_rnn_forward.1} parent=1 // pred_check
      _
    $region7: #{clt_rnn_forward.1} parent=1 // pred_check_branch
      %22 = sbr.rel (0) target = $region9
    $region8: #{clt_rnn_forward.1} parent=1 // pred_region
      _
    $region9: #{clt_rnn_forward.1} parent=1 // pred_fallthru
      _
    // Predicated region
    $region10: #{clt_rnn_forward.1} parent=1 // pred_check
      _
    $region11: #{clt_rnn_forward.1} parent=1 // pred_check_branch
      %24 = sbr.rel (0) target = $region13
    $region12: #{clt_rnn_forward.1} parent=1 // pred_region
      _
    $region13: #{clt_rnn_forward.1} parent=1 // pred_fallthru
      _
    // Predicated region
    $region14: #{clt_rnn_forward.1} parent=1 // pred_check
      _
    $region15: #{clt_rnn_forward.1} parent=1 // pred_check_branch
      %26 = sbr.rel (0) target = $region17
    $region16: #{clt_rnn_forward.1} parent=1 // pred_region
      _
    $region17: #{clt_rnn_forward.1} parent=1 // pred_fallthru
      _
    // Predicated region
    $region18: #{clt_rnn_forward.1} parent=1 // pred_check
      _
    $region19: #{clt_rnn_forward.1} parent=1 // pred_check_branch
      %28 = sbr.rel (0) target = $region21
    $region20: #{clt_rnn_forward.1} parent=1 // pred_region
      _
    $region21: #{clt_rnn_forward.1} parent=1 // pred_fallthru
      _
    // Predicated region
    $region22: #{clt_rnn_forward.1} parent=1 // pred_check
      _
    $region23: #{clt_rnn_forward.1} parent=1 // pred_check_branch
      %30 = sbr.rel (0) target = $region25
    $region24: #{clt_rnn_forward.1} parent=1 // pred_region
      _
    $region25: #{clt_rnn_forward.1} parent=1 // pred_fallthru
      _
    // Predicated region
    $region26: #{clt_rnn_forward.1} parent=1 // pred_check
      _
    $region27: #{clt_rnn_forward.1} parent=1 // pred_check_branch
      %32 = sbr.rel (0) target = $region29
    $region28: #{clt_rnn_forward.1} parent=1 // pred_region
      _
    $region29: #{clt_rnn_forward.1} parent=1 // pred_fallthru
      _
    // Predicated region
    $region30: #{clt_rnn_forward.1} parent=1 // pred_check
      _
    $region31: #{clt_rnn_forward.1} parent=1 // pred_check_branch
      %34 = sbr.rel (0) target = $region33
    $region32: #{clt_rnn_forward.1} parent=1 // pred_region
      _
    $region33: #{clt_rnn_forward.1} parent=1 // pred_fallthru
      _
    // Predicated region
    $region34: #{clt_rnn_forward.1} parent=1 // pred_check
      _
    $region35: #{clt_rnn_forward.1} parent=1 // pred_check_branch
      %36 = sbr.rel (0) target = $region37
    $region36: #{clt_rnn_forward.1} parent=1 // pred_region
      _
    $region37: #{clt_rnn_forward.1} parent=1 // pred_fallthru
      _
    // Predicated region
    $region38: #{clt_rnn_forward.1} parent=1 // pred_check
      _
    $region39: #{clt_rnn_forward.1} parent=1 // pred_check_branch
      %38 = sbr.rel (0) target = $region41
    $region40: #{clt_rnn_forward.1} parent=1 // pred_region
      _
    $region41: #{clt_rnn_forward.1} parent=1 // pred_fallthru
      _
    %v39 = vld [vmem:[%s2] sm:$0xff]
    %v40 = vld [vmem:[%s2 + $0x8] sm:$0xff]
    %v41 = vld [vmem:[%s2 + $0x10] sm:$0xff]
    %v42 = vld [vmem:[%s2 + $0x18] sm:$0xff]
    %v43 = vld [vmem:[%s2 + $0x20] sm:$0xff]
    %v44 = vld [vmem:[%s2 + $0x28] sm:$0xff]
    %v45 = vld [vmem:[%s2 + $0x30] sm:$0xff]
    %v46 = vld [vmem:[%s2 + $0x38] sm:$0xff]
    %v47 = vld [vmem:[%s2 + $0x40] sm:$0xff]
    %v48 = vld [vmem:[%s2 + $0x48] sm:$0xff]
    %v49 = vld [vmem:[%s2 + $0x50] sm:$0xff]
    %v50 = vld [vmem:[%s2 + $0x58] sm:$0xff]
    %v51 = vld [vmem:[%s2 + $0x60] sm:$0xff]
    %v52 = vld [vmem:[%s2 + $0x68] sm:$0xff]
    %v53 = vld [vmem:[%s2 + $0x70] sm:$0xff]
    %v54 = vld [vmem:[%s2 + $0x78] sm:$0xff]
    %v55 = vld [vmem:[%s5] sm:$0xff]
    %v56 = vld [vmem:[%s5 + $0x8] sm:$0xff]
    %v57 = vld [vmem:[%s5 + $0x10] sm:$0xff]
    %v58 = vld [vmem:[%s5 + $0x18] sm:$0xff]
    %v59 = vld [vmem:[%s3] sm:$0xff]
    %v60 = vld [vmem:[%s3 + $0x8] sm:$0xff]
    %v61 = vld [vmem:[%s3 + $0x10] sm:$0xff]
    %v62 = vld [vmem:[%s3 + $0x18] sm:$0xff]
    %v63 = vld [vmem:[%s6] sm:$0xff]
    %v64 = vld [vmem:[%s6 + $0x8] sm:$0xff]
    %v65 = vld [vmem:[%s6 + $0x10] sm:$0xff]
    %v66 = vld [vmem:[%s6 + $0x18] sm:$0xff]
    %v67 = vld [vmem:[%s4] sm:$0x1]
    %v68 = vld [vmem:[%s7] sm:$0x1]
    %v70 = vlaneseq
    %v71 = vshrl.u32 %v70, 7
    %v72 = vsub.s32 0, %v71
    %v73 = vrot.slane %v68, %v72
    %v75 = vld [vmem:[%s0] sm:$0xff]
    %v76 = vld [vmem:[%s0 + $0x8] sm:$0xff]
    %v78 = vlaneseq
    %v79 = vshrl.u32 %v78, 7
    %v80 = vsub.s32 0, %v79
    %v81 = vrot.slane %v67, %v80
    %83 = vmatprep.subr.mxu0 0.0
    %84 = vmatpush1.msra.mxu0 %v39
    %85 = vmatprep.subr.mxu0 0.0
    %86 = vmatpush1.msra.mxu0 %v40
    %87 = vmatprep.subr.mxu0 0.0
    %88 = vmatpush1.msra.mxu0 %v41
    %89 = vmatprep.subr.mxu0 0.0
    %90 = vmatpush1.msra.mxu0 %v42
    %91 = vmatprep.subr.mxu0 0.0
    %92 = vmatpush1.msra.mxu0 %v43
    %93 = vmatprep.subr.mxu0 0.0
    %94 = vmatpush1.msra.mxu0 %v44
    %95 = vmatprep.subr.mxu0 0.0
    %96 = vmatpush1.msra.mxu0 %v45
    %97 = vmatprep.subr.mxu0 0.0
    %98 = vmatpush1.msra.mxu0 %v46
    %99 = vmatprep.subr.mxu0 0.0
    %100 = vmatpush1.msra.mxu0 %v47
    %101 = vmatprep.subr.mxu0 0.0
    %102 = vmatpush1.msra.mxu0 %v48
    %103 = vmatprep.subr.mxu0 0.0
    %104 = vmatpush1.msra.mxu0 %v49
    %105 = vmatprep.subr.mxu0 0.0
    %106 = vmatpush1.msra.mxu0 %v50
    %107 = vmatprep.subr.mxu0 0.0
    %108 = vmatpush1.msra.mxu0 %v51
    %109 = vmatprep.subr.mxu0 0.0
    %110 = vmatpush1.msra.mxu0 %v52
    %111 = vmatprep.subr.mxu0 0.0
    %112 = vmatpush1.msra.mxu0 %v53
    %113 = vmatprep.subr.mxu0 0.0
    %114 = vmatpush1.msra.mxu0 %v54
    %115 = vmatprep.subr.mxu0 0.0
    %116 = vmatpush1.msra.mxu0 0.0
    %117 = vmatprep.subr.mxu0 0.0
    %118 = vmatpush1.msra.mxu0 0.0
    %119 = vmatprep.subr.mxu0 0.0
    %120 = vmatpush1.msra.mxu0 0.0
    %121 = vmatprep.subr.mxu0 0.0
    %122 = vmatpush1.msra.mxu0 0.0
    %123 = vmatprep.subr.mxu0 0.0
    %124 = vmatpush1.msra.mxu0 0.0
    %125 = vmatprep.subr.mxu0 0.0
    %126 = vmatpush1.msra.mxu0 0.0
    %127 = vmatprep.subr.mxu0 0.0
    %128 = vmatpush1.msra.mxu0 0.0
    %129 = vmatprep.subr.mxu0 0.0
    %130 = vmatpush1.msra.mxu0 0.0
    %131 = vmatprep.subr.mxu0 0.0
    %132 = vmatpush1.msra.mxu0 0.0
    %133 = vmatprep.subr.mxu0 0.0
    %134 = vmatpush1.msra.mxu0 0.0
    %135 = vmatprep.subr.mxu0 0.0
    %136 = vmatpush1.msra.mxu0 0.0
    %137 = vmatprep.subr.mxu0 0.0
    %138 = vmatpush1.msra.mxu0 0.0
    %139 = vmatprep.subr.mxu0 0.0
    %140 = vmatpush1.msra.mxu0 0.0
    %141 = vmatprep.subr.mxu0 0.0
    %142 = vmatpush1.msra.mxu0 0.0
    %143 = vmatprep.subr.mxu0 0.0
    %144 = vmatpush1.msra.mxu0 0.0
    %145 = vmatprep.subr.mxu0 0.0
    %146 = vmatpush1.msra.mxu0 0.0
    %147 = vmatprep.mubr.f32.mxu0 0.0
    %148 = vmatmul.mubr.f32.gmra.mrb[0].mxu0 %v75
    %v149 = vpop.f32.mrb[0].mxu0
    %v150 = vadd.f32 %v81, %v149
    %v151 = vpop.f32.mrb[0].mxu0
    %152 = vmatprep.mubr.f32.mxu0 0.0
    %153 = vmatmul.mubr.f32.gmra.mrb[0].mxu0 %v76
    %v154 = vpop.f32.mrb[0].mxu0
    %v155 = vadd.f32 %v81, %v154
    %v156 = vpop.f32.mrb[0].mxu0
    %157 = vdwg.mxu0
    %v158 = vld [vmem:[%s1] sm:$0x3]
    %s159 = scalar_lea.vmem %s1, 2
    %v160 = vld [vmem:[%s159] sm:$0x3]
    %vm161 = vcmask 261120
    %v163 = vsel %vm161, %v158, 0
    %165 = vmatprep.subr.mxu0 0.0
    %166 = vmatpush1.msra.mxu0 %v59
    %167 = vmatprep.subr.mxu0 0.0
    %168 = vmatpush1.msra.mxu0 %v60
    %169 = vmatprep.subr.mxu0 0.0
    %170 = vmatpush1.msra.mxu0 %v61
    %171 = vmatprep.subr.mxu0 0.0
    %172 = vmatpush1.msra.mxu0 %v62
    %173 = vmatprep.subr.mxu0 0.0
    %174 = vmatpush1.msra.mxu0 0.0
    %175 = vmatprep.subr.mxu0 0.0
    %176 = vmatpush1.msra.mxu0 0.0
    %177 = vmatprep.subr.mxu0 0.0
    %178 = vmatpush1.msra.mxu0 0.0
    %179 = vmatprep.subr.mxu0 0.0
    %180 = vmatpush1.msra.mxu0 0.0
    %181 = vmatprep.subr.mxu0 0.0
    %182 = vmatpush1.msra.mxu0 0.0
    %183 = vmatprep.subr.mxu0 0.0
    %184 = vmatpush1.msra.mxu0 0.0
    %185 = vmatprep.subr.mxu0 0.0
    %186 = vmatpush1.msra.mxu0 0.0
    %187 = vmatprep.subr.mxu0 0.0
    %188 = vmatpush1.msra.mxu0 0.0
    %189 = vmatprep.subr.mxu0 0.0
    %190 = vmatpush1.msra.mxu0 0.0
    %191 = vmatprep.subr.mxu0 0.0
    %192 = vmatpush1.msra.mxu0 0.0
    %193 = vmatprep.subr.mxu0 0.0
    %194 = vmatpush1.msra.mxu0 0.0
    %195 = vmatprep.subr.mxu0 0.0
    %196 = vmatpush1.msra.mxu0 0.0
    %197 = vmatprep.subr.mxu0 0.0
    %198 = vmatpush1.msra.mxu0 0.0
    %199 = vmatprep.subr.mxu0 0.0
    %200 = vmatpush1.msra.mxu0 0.0
    %201 = vmatprep.subr.mxu0 0.0
    %202 = vmatpush1.msra.mxu0 0.0
    %203 = vmatprep.subr.mxu0 0.0
    %204 = vmatpush1.msra.mxu0 0.0
    %205 = vmatprep.subr.mxu0 0.0
    %206 = vmatpush1.msra.mxu0 0.0
    %207 = vmatprep.subr.mxu0 0.0
    %208 = vmatpush1.msra.mxu0 0.0
    %209 = vmatprep.subr.mxu0 0.0
    %210 = vmatpush1.msra.mxu0 0.0
    %211 = vmatprep.subr.mxu0 0.0
    %212 = vmatpush1.msra.mxu0 0.0
    %213 = vmatprep.subr.mxu0 0.0
    %214 = vmatpush1.msra.mxu0 0.0
    %215 = vmatprep.subr.mxu0 0.0
    %216 = vmatpush1.msra.mxu0 0.0
    %217 = vmatprep.subr.mxu0 0.0
    %218 = vmatpush1.msra.mxu0 0.0
    %219 = vmatprep.subr.mxu0 0.0
    %220 = vmatpush1.msra.mxu0 0.0
    %221 = vmatprep.subr.mxu0 0.0
    %222 = vmatpush1.msra.mxu0 0.0
    %223 = vmatprep.subr.mxu0 0.0
    %224 = vmatpush1.msra.mxu0 0.0
    %225 = vmatprep.subr.mxu0 0.0
    %226 = vmatpush1.msra.mxu0 0.0
    %227 = vmatprep.subr.mxu0 0.0
    %228 = vmatpush1.msra.mxu0 0.0
    %229 = vmatprep.mubr.f32.mxu0 0.0
    %230 = vmatmul.mubr.f32.gmra.mrb[0].mxu0 %v163
    %v231 = vpop.f32.mrb[0].mxu0
    %v232 = vadd.f32 0.0, %v231
    %v233 = vpop.f32.mrb[0].mxu0
    %234 = vdwg.mxu0
    %v235 = vadd.f32 %v150, %v232
    %v236 = vtanh.pop %v235
    %v238 = vsel %vm161, %v236, 0
    %240 = vmatprep.subr.mxu0 0.0
    %241 = vmatpush1.msra.mxu0 %v59
    %242 = vmatprep.subr.mxu0 0.0
    %243 = vmatpush1.msra.mxu0 %v60
    %244 = vmatprep.subr.mxu0 0.0
    %245 = vmatpush1.msra.mxu0 %v61
    %246 = vmatprep.subr.mxu0 0.0
    %247 = vmatpush1.msra.mxu0 %v62
    %248 = vmatprep.subr.mxu0 0.0
    %249 = vmatpush1.msra.mxu0 0.0
    %250 = vmatprep.subr.mxu0 0.0
    %251 = vmatpush1.msra.mxu0 0.0
    %252 = vmatprep.subr.mxu0 0.0
    %253 = vmatpush1.msra.mxu0 0.0
    %254 = vmatprep.subr.mxu0 0.0
    %255 = vmatpush1.msra.mxu0 0.0
    %256 = vmatprep.subr.mxu0 0.0
    %257 = vmatpush1.msra.mxu0 0.0
    %258 = vmatprep.subr.mxu0 0.0
    %259 = vmatpush1.msra.mxu0 0.0
    %260 = vmatprep.subr.mxu0 0.0
    %261 = vmatpush1.msra.mxu0 0.0
    %262 = vmatprep.subr.mxu0 0.0
    %263 = vmatpush1.msra.mxu0 0.0
    %264 = vmatprep.subr.mxu0 0.0
    %265 = vmatpush1.msra.mxu0 0.0
    %266 = vmatprep.subr.mxu0 0.0
    %267 = vmatpush1.msra.mxu0 0.0
    %268 = vmatprep.subr.mxu0 0.0
    %269 = vmatpush1.msra.mxu0 0.0
    %270 = vmatprep.subr.mxu0 0.0
    %271 = vmatpush1.msra.mxu0 0.0
    %272 = vmatprep.subr.mxu0 0.0
    %273 = vmatpush1.msra.mxu0 0.0
    %274 = vmatprep.subr.mxu0 0.0
    %275 = vmatpush1.msra.mxu0 0.0
    %276 = vmatprep.subr.mxu0 0.0
    %277 = vmatpush1.msra.mxu0 0.0
    %278 = vmatprep.subr.mxu0 0.0
    %279 = vmatpush1.msra.mxu0 0.0
    %280 = vmatprep.subr.mxu0 0.0
    %281 = vmatpush1.msra.mxu0 0.0
    %282 = vmatprep.subr.mxu0 0.0
    %283 = vmatpush1.msra.mxu0 0.0
    %284 = vmatprep.subr.mxu0 0.0
    %285 = vmatpush1.msra.mxu0 0.0
    %286 = vmatprep.subr.mxu0 0.0
    %287 = vmatpush1.msra.mxu0 0.0
    %288 = vmatprep.subr.mxu0 0.0
    %289 = vmatpush1.msra.mxu0 0.0
    %290 = vmatprep.subr.mxu0 0.0
    %291 = vmatpush1.msra.mxu0 0.0
    %292 = vmatprep.subr.mxu0 0.0
    %293 = vmatpush1.msra.mxu0 0.0
    %294 = vmatprep.subr.mxu0 0.0
    %295 = vmatpush1.msra.mxu0 0.0
    %296 = vmatprep.subr.mxu0 0.0
    %297 = vmatpush1.msra.mxu0 0.0
    %298 = vmatprep.subr.mxu0 0.0
    %299 = vmatpush1.msra.mxu0 0.0
    %300 = vmatprep.subr.mxu0 0.0
    %301 = vmatpush1.msra.mxu0 0.0
    %302 = vmatprep.subr.mxu0 0.0
    %303 = vmatpush1.msra.mxu0 0.0
    %304 = vmatprep.mubr.f32.mxu0 0.0
    %305 = vmatmul.mubr.f32.gmra.mrb[0].mxu0 %v238
    %v306 = vpop.f32.mrb[0].mxu0
    %v307 = vadd.f32 0.0, %v306
    %v308 = vpop.f32.mrb[0].mxu0
    %309 = vdwg.mxu0
    %v311 = vrot.slane %v307, 6
    %v313 = vadd.f32 %v150, %v311
    %v314 = vtanh.pop %v313
    %315 = vmatprep.subr.mxu0 0.0
    %316 = vmatpush1.msra.mxu0 %v55
    %317 = vmatprep.subr.mxu0 0.0
    %318 = vmatpush1.msra.mxu0 %v56
    %319 = vmatprep.subr.mxu0 0.0
    %320 = vmatpush1.msra.mxu0 %v57
    %321 = vmatprep.subr.mxu0 0.0
    %322 = vmatpush1.msra.mxu0 %v58
    %323 = vmatprep.subr.mxu0 0.0
    %324 = vmatpush1.msra.mxu0 0.0
    %325 = vmatprep.subr.mxu0 0.0
    %326 = vmatpush1.msra.mxu0 0.0
    %327 = vmatprep.subr.mxu0 0.0
    %328 = vmatpush1.msra.mxu0 0.0
    %329 = vmatprep.subr.mxu0 0.0
    %330 = vmatpush1.msra.mxu0 0.0
    %331 = vmatprep.subr.mxu0 0.0
    %332 = vmatpush1.msra.mxu0 0.0
    %333 = vmatprep.subr.mxu0 0.0
    %334 = vmatpush1.msra.mxu0 0.0
    %335 = vmatprep.subr.mxu0 0.0
    %336 = vmatpush1.msra.mxu0 0.0
    %337 = vmatprep.subr.mxu0 0.0
    %338 = vmatpush1.msra.mxu0 0.0
    %339 = vmatprep.subr.mxu0 0.0
    %340 = vmatpush1.msra.mxu0 0.0
    %341 = vmatprep.subr.mxu0 0.0
    %342 = vmatpush1.msra.mxu0 0.0
    %343 = vmatprep.subr.mxu0 0.0
    %344 = vmatpush1.msra.mxu0 0.0
    %345 = vmatprep.subr.mxu0 0.0
    %346 = vmatpush1.msra.mxu0 0.0
    %347 = vmatprep.subr.mxu0 0.0
    %348 = vmatpush1.msra.mxu0 0.0
    %349 = vmatprep.subr.mxu0 0.0
    %350 = vmatpush1.msra.mxu0 0.0
    %351 = vmatprep.subr.mxu0 0.0
    %352 = vmatpush1.msra.mxu0 0.0
    %353 = vmatprep.subr.mxu0 0.0
    %354 = vmatpush1.msra.mxu0 0.0
    %355 = vmatprep.subr.mxu0 0.0
    %356 = vmatpush1.msra.mxu0 0.0
    %357 = vmatprep.subr.mxu0 0.0
    %358 = vmatpush1.msra.mxu0 0.0
    %359 = vmatprep.subr.mxu0 0.0
    %360 = vmatpush1.msra.mxu0 0.0
    %361 = vmatprep.subr.mxu0 0.0
    %362 = vmatpush1.msra.mxu0 0.0
    %363 = vmatprep.subr.mxu0 0.0
    %364 = vmatpush1.msra.mxu0 0.0
    %365 = vmatprep.subr.mxu0 0.0
    %366 = vmatpush1.msra.mxu0 0.0
    %367 = vmatprep.subr.mxu0 0.0
    %368 = vmatpush1.msra.mxu0 0.0
    %369 = vmatprep.subr.mxu0 0.0
    %370 = vmatpush1.msra.mxu0 0.0
    %371 = vmatprep.subr.mxu0 0.0
    %372 = vmatpush1.msra.mxu0 0.0
    %373 = vmatprep.subr.mxu0 0.0
    %374 = vmatpush1.msra.mxu0 0.0
    %375 = vmatprep.subr.mxu0 0.0
    %376 = vmatpush1.msra.mxu0 0.0
    %377 = vmatprep.subr.mxu0 0.0
    %378 = vmatpush1.msra.mxu0 0.0
    %379 = vmatprep.mubr.f32.mxu0 0.0
    %380 = vmatmul.mubr.f32.gmra.mrb[0].mxu0 %v238
    %v381 = vpop.f32.mrb[0].mxu0
    %v382 = vadd.f32 %v73, %v381
    %v383 = vpop.f32.mrb[0].mxu0
    %384 = vdwg.mxu0
    %v386 = vsel %vm161, %v160, 0
    %388 = vmatprep.subr.mxu0 0.0
    %389 = vmatpush1.msra.mxu0 %v63
    %390 = vmatprep.subr.mxu0 0.0
    %391 = vmatpush1.msra.mxu0 %v64
    %392 = vmatprep.subr.mxu0 0.0
    %393 = vmatpush1.msra.mxu0 %v65
    %394 = vmatprep.subr.mxu0 0.0
    %395 = vmatpush1.msra.mxu0 %v66
    %396 = vmatprep.subr.mxu0 0.0
    %397 = vmatpush1.msra.mxu0 0.0
    %398 = vmatprep.subr.mxu0 0.0
    %399 = vmatpush1.msra.mxu0 0.0
    %400 = vmatprep.subr.mxu0 0.0
    %401 = vmatpush1.msra.mxu0 0.0
    %402 = vmatprep.subr.mxu0 0.0
    %403 = vmatpush1.msra.mxu0 0.0
    %404 = vmatprep.subr.mxu0 0.0
    %405 = vmatpush1.msra.mxu0 0.0
    %406 = vmatprep.subr.mxu0 0.0
    %407 = vmatpush1.msra.mxu0 0.0
    %408 = vmatprep.subr.mxu0 0.0
    %409 = vmatpush1.msra.mxu0 0.0
    %410 = vmatprep.subr.mxu0 0.0
    %411 = vmatpush1.msra.mxu0 0.0
    %412 = vmatprep.subr.mxu0 0.0
    %413 = vmatpush1.msra.mxu0 0.0
    %414 = vmatprep.subr.mxu0 0.0
    %415 = vmatpush1.msra.mxu0 0.0
    %416 = vmatprep.subr.mxu0 0.0
    %417 = vmatpush1.msra.mxu0 0.0
    %418 = vmatprep.subr.mxu0 0.0
    %419 = vmatpush1.msra.mxu0 0.0
    %420 = vmatprep.subr.mxu0 0.0
    %421 = vmatpush1.msra.mxu0 0.0
    %422 = vmatprep.subr.mxu0 0.0
    %423 = vmatpush1.msra.mxu0 0.0
    %424 = vmatprep.subr.mxu0 0.0
    %425 = vmatpush1.msra.mxu0 0.0
    %426 = vmatprep.subr.mxu0 0.0
    %427 = vmatpush1.msra.mxu0 0.0
    %428 = vmatprep.subr.mxu0 0.0
    %429 = vmatpush1.msra.mxu0 0.0
    %430 = vmatprep.subr.mxu0 0.0
    %431 = vmatpush1.msra.mxu0 0.0
    %432 = vmatprep.subr.mxu0 0.0
    %433 = vmatpush1.msra.mxu0 0.0
    %434 = vmatprep.subr.mxu0 0.0
    %435 = vmatpush1.msra.mxu0 0.0
    %436 = vmatprep.subr.mxu0 0.0
    %437 = vmatpush1.msra.mxu0 0.0
    %438 = vmatprep.subr.mxu0 0.0
    %439 = vmatpush1.msra.mxu0 0.0
    %440 = vmatprep.subr.mxu0 0.0
    %441 = vmatpush1.msra.mxu0 0.0
    %442 = vmatprep.subr.mxu0 0.0
    %443 = vmatpush1.msra.mxu0 0.0
    %444 = vmatprep.subr.mxu0 0.0
    %445 = vmatpush1.msra.mxu0 0.0
    %446 = vmatprep.subr.mxu0 0.0
    %447 = vmatpush1.msra.mxu0 0.0
    %448 = vmatprep.subr.mxu0 0.0
    %449 = vmatpush1.msra.mxu0 0.0
    %450 = vmatprep.subr.mxu0 0.0
    %451 = vmatpush1.msra.mxu0 0.0
    %452 = vmatprep.mubr.f32.mxu0 0.0
    %453 = vmatmul.mubr.f32.gmra.mrb[0].mxu0 %v386
    %v454 = vpop.f32.mrb[0].mxu0
    %v455 = vadd.f32 0.0, %v454
    %v456 = vpop.f32.mrb[0].mxu0
    %457 = vdwg.mxu0
    %v458 = vadd.f32 %v382, %v455
    %v459 = vtanh.pop %v458
    %v461 = vrot.slane %v314, 2
    %v462 = vsel %vm161, %v461, 0
    %464 = vmatprep.subr.mxu0 0.0
    %465 = vmatpush1.msra.mxu0 %v59
    %466 = vmatprep.subr.mxu0 0.0
    %467 = vmatpush1.msra.mxu0 %v60
    %468 = vmatprep.subr.mxu0 0.0
    %469 = vmatpush1.msra.mxu0 %v61
    %470 = vmatprep.subr.mxu0 0.0
    %471 = vmatpush1.msra.mxu0 %v62
    %472 = vmatprep.subr.mxu0 0.0
    %473 = vmatpush1.msra.mxu0 0.0
    %474 = vmatprep.subr.mxu0 0.0
    %475 = vmatpush1.msra.mxu0 0.0
    %476 = vmatprep.subr.mxu0 0.0
    %477 = vmatpush1.msra.mxu0 0.0
    %478 = vmatprep.subr.mxu0 0.0
    %479 = vmatpush1.msra.mxu0 0.0
    %480 = vmatprep.subr.mxu0 0.0
    %481 = vmatpush1.msra.mxu0 0.0
    %482 = vmatprep.subr.mxu0 0.0
    %483 = vmatpush1.msra.mxu0 0.0
    %484 = vmatprep.subr.mxu0 0.0
    %485 = vmatpush1.msra.mxu0 0.0
    %486 = vmatprep.subr.mxu0 0.0
    %487 = vmatpush1.msra.mxu0 0.0
    %488 = vmatprep.subr.mxu0 0.0
    %489 = vmatpush1.msra.mxu0 0.0
    %490 = vmatprep.subr.mxu0 0.0
    %491 = vmatpush1.msra.mxu0 0.0
    %492 = vmatprep.subr.mxu0 0.0
    %493 = vmatpush1.msra.mxu0 0.0
    %494 = vmatprep.subr.mxu0 0.0
    %495 = vmatpush1.msra.mxu0 0.0
    %496 = vmatprep.subr.mxu0 0.0
    %497 = vmatpush1.msra.mxu0 0.0
    %498 = vmatprep.subr.mxu0 0.0
    %499 = vmatpush1.msra.mxu0 0.0
    %500 = vmatprep.subr.mxu0 0.0
    %501 = vmatpush1.msra.mxu0 0.0
    %502 = vmatprep.subr.mxu0 0.0
    %503 = vmatpush1.msra.mxu0 0.0
    %504 = vmatprep.subr.mxu0 0.0
    %505 = vmatpush1.msra.mxu0 0.0
    %506 = vmatprep.subr.mxu0 0.0
    %507 = vmatpush1.msra.mxu0 0.0
    %508 = vmatprep.subr.mxu0 0.0
    %509 = vmatpush1.msra.mxu0 0.0
    %510 = vmatprep.subr.mxu0 0.0
    %511 = vmatpush1.msra.mxu0 0.0
    %512 = vmatprep.subr.mxu0 0.0
    %513 = vmatpush1.msra.mxu0 0.0
    %514 = vmatprep.subr.mxu0 0.0
    %515 = vmatpush1.msra.mxu0 0.0
    %516 = vmatprep.subr.mxu0 0.0
    %517 = vmatpush1.msra.mxu0 0.0
    %518 = vmatprep.subr.mxu0 0.0
    %519 = vmatpush1.msra.mxu0 0.0
    %520 = vmatprep.subr.mxu0 0.0
    %521 = vmatpush1.msra.mxu0 0.0
    %522 = vmatprep.subr.mxu0 0.0
    %523 = vmatpush1.msra.mxu0 0.0
    %524 = vmatprep.subr.mxu0 0.0
    %525 = vmatpush1.msra.mxu0 0.0
    %526 = vmatprep.subr.mxu0 0.0
    %527 = vmatpush1.msra.mxu0 0.0
    %528 = vmatprep.mubr.f32.mxu0 0.0
    %529 = vmatmul.mubr.f32.gmra.mrb[0].mxu0 %v462
    %v530 = vpop.f32.mrb[0].mxu0
    %v531 = vadd.f32 0.0, %v530
    %v532 = vpop.f32.mrb[0].mxu0
    %533 = vdwg.mxu0
    %v535 = vrot.slane %v531, 4
    %v537 = vadd.f32 %v150, %v535
    %v538 = vtanh.pop %v537
    %539 = vmatprep.subr.mxu0 0.0
    %540 = vmatpush1.msra.mxu0 %v55
    %541 = vmatprep.subr.mxu0 0.0
    %542 = vmatpush1.msra.mxu0 %v56
    %543 = vmatprep.subr.mxu0 0.0
    %544 = vmatpush1.msra.mxu0 %v57
    %545 = vmatprep.subr.mxu0 0.0
    %546 = vmatpush1.msra.mxu0 %v58
    %547 = vmatprep.subr.mxu0 0.0
    %548 = vmatpush1.msra.mxu0 0.0
    %549 = vmatprep.subr.mxu0 0.0
    %550 = vmatpush1.msra.mxu0 0.0
    %551 = vmatprep.subr.mxu0 0.0
    %552 = vmatpush1.msra.mxu0 0.0
    %553 = vmatprep.subr.mxu0 0.0
    %554 = vmatpush1.msra.mxu0 0.0
    %555 = vmatprep.subr.mxu0 0.0
    %556 = vmatpush1.msra.mxu0 0.0
    %557 = vmatprep.subr.mxu0 0.0
    %558 = vmatpush1.msra.mxu0 0.0
    %559 = vmatprep.subr.mxu0 0.0
    %560 = vmatpush1.msra.mxu0 0.0
    %561 = vmatprep.subr.mxu0 0.0
    %562 = vmatpush1.msra.mxu0 0.0
    %563 = vmatprep.subr.mxu0 0.0
    %564 = vmatpush1.msra.mxu0 0.0
    %565 = vmatprep.subr.mxu0 0.0
    %566 = vmatpush1.msra.mxu0 0.0
    %567 = vmatprep.subr.mxu0 0.0
    %568 = vmatpush1.msra.mxu0 0.0
    %569 = vmatprep.subr.mxu0 0.0
    %570 = vmatpush1.msra.mxu0 0.0
    %571 = vmatprep.subr.mxu0 0.0
    %572 = vmatpush1.msra.mxu0 0.0
    %573 = vmatprep.subr.mxu0 0.0
    %574 = vmatpush1.msra.mxu0 0.0
    %575 = vmatprep.subr.mxu0 0.0
    %576 = vmatpush1.msra.mxu0 0.0
    %577 = vmatprep.subr.mxu0 0.0
    %578 = vmatpush1.msra.mxu0 0.0
    %579 = vmatprep.subr.mxu0 0.0
    %580 = vmatpush1.msra.mxu0 0.0
    %581 = vmatprep.subr.mxu0 0.0
    %582 = vmatpush1.msra.mxu0 0.0
    %583 = vmatprep.subr.mxu0 0.0
    %584 = vmatpush1.msra.mxu0 0.0
    %585 = vmatprep.subr.mxu0 0.0
    %586 = vmatpush1.msra.mxu0 0.0
    %587 = vmatprep.subr.mxu0 0.0
    %588 = vmatpush1.msra.mxu0 0.0
    %589 = vmatprep.subr.mxu0 0.0
    %590 = vmatpush1.msra.mxu0 0.0
    %591 = vmatprep.subr.mxu0 0.0
    %592 = vmatpush1.msra.mxu0 0.0
    %593 = vmatprep.subr.mxu0 0.0
    %594 = vmatpush1.msra.mxu0 0.0
    %595 = vmatprep.subr.mxu0 0.0
    %596 = vmatpush1.msra.mxu0 0.0
    %597 = vmatprep.subr.mxu0 0.0
    %598 = vmatpush1.msra.mxu0 0.0
    %599 = vmatprep.subr.mxu0 0.0
    %600 = vmatpush1.msra.mxu0 0.0
    %601 = vmatprep.subr.mxu0 0.0
    %602 = vmatpush1.msra.mxu0 0.0
    %603 = vmatprep.mubr.f32.mxu0 0.0
    %604 = vmatmul.mubr.f32.gmra.mrb[0].mxu0 %v462
    %v605 = vpop.f32.mrb[0].mxu0
    %v606 = vadd.f32 %v73, %v605
    %v607 = vpop.f32.mrb[0].mxu0
    %608 = vdwg.mxu0
    %v610 = vsel %vm161, %v459, 0
    %612 = vmatprep.subr.mxu0 0.0
    %613 = vmatpush1.msra.mxu0 %v63
    %614 = vmatprep.subr.mxu0 0.0
    %615 = vmatpush1.msra.mxu0 %v64
    %616 = vmatprep.subr.mxu0 0.0
    %617 = vmatpush1.msra.mxu0 %v65
    %618 = vmatprep.subr.mxu0 0.0
    %619 = vmatpush1.msra.mxu0 %v66
    %620 = vmatprep.subr.mxu0 0.0
    %621 = vmatpush1.msra.mxu0 0.0
    %622 = vmatprep.subr.mxu0 0.0
    %623 = vmatpush1.msra.mxu0 0.0
    %624 = vmatprep.subr.mxu0 0.0
    %625 = vmatpush1.msra.mxu0 0.0
    %626 = vmatprep.subr.mxu0 0.0
    %627 = vmatpush1.msra.mxu0 0.0
    %628 = vmatprep.subr.mxu0 0.0
    %629 = vmatpush1.msra.mxu0 0.0
    %630 = vmatprep.subr.mxu0 0.0
    %631 = vmatpush1.msra.mxu0 0.0
    %632 = vmatprep.subr.mxu0 0.0
    %633 = vmatpush1.msra.mxu0 0.0
    %634 = vmatprep.subr.mxu0 0.0
    %635 = vmatpush1.msra.mxu0 0.0
    %636 = vmatprep.subr.mxu0 0.0
    %637 = vmatpush1.msra.mxu0 0.0
    %638 = vmatprep.subr.mxu0 0.0
    %639 = vmatpush1.msra.mxu0 0.0
    %640 = vmatprep.subr.mxu0 0.0
    %641 = vmatpush1.msra.mxu0 0.0
    %642 = vmatprep.subr.mxu0 0.0
    %643 = vmatpush1.msra.mxu0 0.0
    %644 = vmatprep.subr.mxu0 0.0
    %645 = vmatpush1.msra.mxu0 0.0
    %646 = vmatprep.subr.mxu0 0.0
    %647 = vmatpush1.msra.mxu0 0.0
    %648 = vmatprep.subr.mxu0 0.0
    %649 = vmatpush1.msra.mxu0 0.0
    %650 = vmatprep.subr.mxu0 0.0
    %651 = vmatpush1.msra.mxu0 0.0
    %652 = vmatprep.subr.mxu0 0.0
    %653 = vmatpush1.msra.mxu0 0.0
    %654 = vmatprep.subr.mxu0 0.0
    %655 = vmatpush1.msra.mxu0 0.0
    %656 = vmatprep.subr.mxu0 0.0
    %657 = vmatpush1.msra.mxu0 0.0
    %658 = vmatprep.subr.mxu0 0.0
    %659 = vmatpush1.msra.mxu0 0.0
    %660 = vmatprep.subr.mxu0 0.0
    %661 = vmatpush1.msra.mxu0 0.0
    %662 = vmatprep.subr.mxu0 0.0
    %663 = vmatpush1.msra.mxu0 0.0
    %664 = vmatprep.subr.mxu0 0.0
    %665 = vmatpush1.msra.mxu0 0.0
    %666 = vmatprep.subr.mxu0 0.0
    %667 = vmatpush1.msra.mxu0 0.0
    %668 = vmatprep.subr.mxu0 0.0
    %669 = vmatpush1.msra.mxu0 0.0
    %670 = vmatprep.subr.mxu0 0.0
    %671 = vmatpush1.msra.mxu0 0.0
    %672 = vmatprep.subr.mxu0 0.0
    %673 = vmatpush1.msra.mxu0 0.0
    %674 = vmatprep.subr.mxu0 0.0
    %675 = vmatpush1.msra.mxu0 0.0
    %676 = vmatprep.mubr.f32.mxu0 0.0
    %677 = vmatmul.mubr.f32.gmra.mrb[0].mxu0 %v610
    %v678 = vpop.f32.mrb[0].mxu0
    %v679 = vadd.f32 0.0, %v678
    %v680 = vpop.f32.mrb[0].mxu0
    %681 = vdwg.mxu0
    %v682 = vadd.f32 %v606, %v679
    %v683 = vtanh.pop %v682
    %v685 = vrot.slane %v538, 4
    %v686 = vsel %vm161, %v685, 0
    %688 = vmatprep.subr.mxu0 0.0
    %689 = vmatpush1.msra.mxu0 %v59
    %690 = vmatprep.subr.mxu0 0.0
    %691 = vmatpush1.msra.mxu0 %v60
    %692 = vmatprep.subr.mxu0 0.0
    %693 = vmatpush1.msra.mxu0 %v61
    %694 = vmatprep.subr.mxu0 0.0
    %695 = vmatpush1.msra.mxu0 %v62
    %696 = vmatprep.subr.mxu0 0.0
    %697 = vmatpush1.msra.mxu0 0.0
    %698 = vmatprep.subr.mxu0 0.0
    %699 = vmatpush1.msra.mxu0 0.0
    %700 = vmatprep.subr.mxu0 0.0
    %701 = vmatpush1.msra.mxu0 0.0
    %702 = vmatprep.subr.mxu0 0.0
    %703 = vmatpush1.msra.mxu0 0.0
    %704 = vmatprep.subr.mxu0 0.0
    %705 = vmatpush1.msra.mxu0 0.0
    %706 = vmatprep.subr.mxu0 0.0
    %707 = vmatpush1.msra.mxu0 0.0
    %708 = vmatprep.subr.mxu0 0.0
    %709 = vmatpush1.msra.mxu0 0.0
    %710 = vmatprep.subr.mxu0 0.0
    %711 = vmatpush1.msra.mxu0 0.0
    %712 = vmatprep.subr.mxu0 0.0
    %713 = vmatpush1.msra.mxu0 0.0
    %714 = vmatprep.subr.mxu0 0.0
    %715 = vmatpush1.msra.mxu0 0.0
    %716 = vmatprep.subr.mxu0 0.0
    %717 = vmatpush1.msra.mxu0 0.0
    %718 = vmatprep.subr.mxu0 0.0
    %719 = vmatpush1.msra.mxu0 0.0
    %720 = vmatprep.subr.mxu0 0.0
    %721 = vmatpush1.msra.mxu0 0.0
    %722 = vmatprep.subr.mxu0 0.0
    %723 = vmatpush1.msra.mxu0 0.0
    %724 = vmatprep.subr.mxu0 0.0
    %725 = vmatpush1.msra.mxu0 0.0
    %726 = vmatprep.subr.mxu0 0.0
    %727 = vmatpush1.msra.mxu0 0.0
    %728 = vmatprep.subr.mxu0 0.0
    %729 = vmatpush1.msra.mxu0 0.0
    %730 = vmatprep.subr.mxu0 0.0
    %731 = vmatpush1.msra.mxu0 0.0
    %732 = vmatprep.subr.mxu0 0.0
    %733 = vmatpush1.msra.mxu0 0.0
    %734 = vmatprep.subr.mxu0 0.0
    %735 = vmatpush1.msra.mxu0 0.0
    %736 = vmatprep.subr.mxu0 0.0
    %737 = vmatpush1.msra.mxu0 0.0
    %738 = vmatprep.subr.mxu0 0.0
    %739 = vmatpush1.msra.mxu0 0.0
    %740 = vmatprep.subr.mxu0 0.0
    %741 = vmatpush1.msra.mxu0 0.0
    %742 = vmatprep.subr.mxu0 0.0
    %743 = vmatpush1.msra.mxu0 0.0
    %744 = vmatprep.subr.mxu0 0.0
    %745 = vmatpush1.msra.mxu0 0.0
    %746 = vmatprep.subr.mxu0 0.0
    %747 = vmatpush1.msra.mxu0 0.0
    %748 = vmatprep.subr.mxu0 0.0
    %749 = vmatpush1.msra.mxu0 0.0
    %750 = vmatprep.subr.mxu0 0.0
    %751 = vmatpush1.msra.mxu0 0.0
    %752 = vmatprep.mubr.f32.mxu0 0.0
    %753 = vmatmul.mubr.f32.gmra.mrb[0].mxu0 %v686
    %v754 = vpop.f32.mrb[0].mxu0
    %v755 = vadd.f32 0.0, %v754
    %v756 = vpop.f32.mrb[0].mxu0
    %757 = vdwg.mxu0
    %v759 = vrot.slane %v755, 2
    %v761 = vadd.f32 %v150, %v759
    %v762 = vtanh.pop %v761
    %763 = vmatprep.subr.mxu0 0.0
    %764 = vmatpush1.msra.mxu0 %v55
    %765 = vmatprep.subr.mxu0 0.0
    %766 = vmatpush1.msra.mxu0 %v56
    %767 = vmatprep.subr.mxu0 0.0
    %768 = vmatpush1.msra.mxu0 %v57
    %769 = vmatprep.subr.mxu0 0.0
    %770 = vmatpush1.msra.mxu0 %v58
    %771 = vmatprep.subr.mxu0 0.0
    %772 = vmatpush1.msra.mxu0 0.0
    %773 = vmatprep.subr.mxu0 0.0
    %774 = vmatpush1.msra.mxu0 0.0
    %775 = vmatprep.subr.mxu0 0.0
    %776 = vmatpush1.msra.mxu0 0.0
    %777 = vmatprep.subr.mxu0 0.0
    %778 = vmatpush1.msra.mxu0 0.0
    %779 = vmatprep.subr.mxu0 0.0
    %780 = vmatpush1.msra.mxu0 0.0
    %781 = vmatprep.subr.mxu0 0.0
    %782 = vmatpush1.msra.mxu0 0.0
    %783 = vmatprep.subr.mxu0 0.0
    %784 = vmatpush1.msra.mxu0 0.0
    %785 = vmatprep.subr.mxu0 0.0
    %786 = vmatpush1.msra.mxu0 0.0
    %787 = vmatprep.subr.mxu0 0.0
    %788 = vmatpush1.msra.mxu0 0.0
    %789 = vmatprep.subr.mxu0 0.0
    %790 = vmatpush1.msra.mxu0 0.0
    %791 = vmatprep.subr.mxu0 0.0
    %792 = vmatpush1.msra.mxu0 0.0
    %793 = vmatprep.subr.mxu0 0.0
    %794 = vmatpush1.msra.mxu0 0.0
    %795 = vmatprep.subr.mxu0 0.0
    %796 = vmatpush1.msra.mxu0 0.0
    %797 = vmatprep.subr.mxu0 0.0
    %798 = vmatpush1.msra.mxu0 0.0
    %799 = vmatprep.subr.mxu0 0.0
    %800 = vmatpush1.msra.mxu0 0.0
    %801 = vmatprep.subr.mxu0 0.0
    %802 = vmatpush1.msra.mxu0 0.0
    %803 = vmatprep.subr.mxu0 0.0
    %804 = vmatpush1.msra.mxu0 0.0
    %805 = vmatprep.subr.mxu0 0.0
    %806 = vmatpush1.msra.mxu0 0.0
    %807 = vmatprep.subr.mxu0 0.0
    %808 = vmatpush1.msra.mxu0 0.0
    %809 = vmatprep.subr.mxu0 0.0
    %810 = vmatpush1.msra.mxu0 0.0
    %811 = vmatprep.subr.mxu0 0.0
    %812 = vmatpush1.msra.mxu0 0.0
    %813 = vmatprep.subr.mxu0 0.0
    %814 = vmatpush1.msra.mxu0 0.0
    %815 = vmatprep.subr.mxu0 0.0
    %816 = vmatpush1.msra.mxu0 0.0
    %817 = vmatprep.subr.mxu0 0.0
    %818 = vmatpush1.msra.mxu0 0.0
    %819 = vmatprep.subr.mxu0 0.0
    %820 = vmatpush1.msra.mxu0 0.0
    %821 = vmatprep.subr.mxu0 0.0
    %822 = vmatpush1.msra.mxu0 0.0
    %823 = vmatprep.subr.mxu0 0.0
    %824 = vmatpush1.msra.mxu0 0.0
    %825 = vmatprep.subr.mxu0 0.0
    %826 = vmatpush1.msra.mxu0 0.0
    %827 = vmatprep.mubr.f32.mxu0 0.0
    %828 = vmatmul.mubr.f32.gmra.mrb[0].mxu0 %v686
    %v829 = vpop.f32.mrb[0].mxu0
    %v830 = vadd.f32 %v73, %v829
    %v831 = vpop.f32.mrb[0].mxu0
    %832 = vdwg.mxu0
    %v834 = vsel %vm161, %v683, 0
    %836 = vmatprep.subr.mxu0 0.0
    %837 = vmatpush1.msra.mxu0 %v63
    %838 = vmatprep.subr.mxu0 0.0
    %839 = vmatpush1.msra.mxu0 %v64
    %840 = vmatprep.subr.mxu0 0.0
    %841 = vmatpush1.msra.mxu0 %v65
    %842 = vmatprep.subr.mxu0 0.0
    %843 = vmatpush1.msra.mxu0 %v66
    %844 = vmatprep.subr.mxu0 0.0
    %845 = vmatpush1.msra.mxu0 0.0
    %846 = vmatprep.subr.mxu0 0.0
    %847 = vmatpush1.msra.mxu0 0.0
    %848 = vmatprep.subr.mxu0 0.0
    %849 = vmatpush1.msra.mxu0 0.0
    %850 = vmatprep.subr.mxu0 0.0
    %851 = vmatpush1.msra.mxu0 0.0
    %852 = vmatprep.subr.mxu0 0.0
    %853 = vmatpush1.msra.mxu0 0.0
    %854 = vmatprep.subr.mxu0 0.0
    %855 = vmatpush1.msra.mxu0 0.0
    %856 = vmatprep.subr.mxu0 0.0
    %857 = vmatpush1.msra.mxu0 0.0
    %858 = vmatprep.subr.mxu0 0.0
    %859 = vmatpush1.msra.mxu0 0.0
    %860 = vmatprep.subr.mxu0 0.0
    %861 = vmatpush1.msra.mxu0 0.0
    %862 = vmatprep.subr.mxu0 0.0
    %863 = vmatpush1.msra.mxu0 0.0
    %864 = vmatprep.subr.mxu0 0.0
    %865 = vmatpush1.msra.mxu0 0.0
    %866 = vmatprep.subr.mxu0 0.0
    %867 = vmatpush1.msra.mxu0 0.0
    %868 = vmatprep.subr.mxu0 0.0
    %869 = vmatpush1.msra.mxu0 0.0
    %870 = vmatprep.subr.mxu0 0.0
    %871 = vmatpush1.msra.mxu0 0.0
    %872 = vmatprep.subr.mxu0 0.0
    %873 = vmatpush1.msra.mxu0 0.0
    %874 = vmatprep.subr.mxu0 0.0
    %875 = vmatpush1.msra.mxu0 0.0
    %876 = vmatprep.subr.mxu0 0.0
    %877 = vmatpush1.msra.mxu0 0.0
    %878 = vmatprep.subr.mxu0 0.0
    %879 = vmatpush1.msra.mxu0 0.0
    %880 = vmatprep.subr.mxu0 0.0
    %881 = vmatpush1.msra.mxu0 0.0
    %882 = vmatprep.subr.mxu0 0.0
    %883 = vmatpush1.msra.mxu0 0.0
    %884 = vmatprep.subr.mxu0 0.0
    %885 = vmatpush1.msra.mxu0 0.0
    %886 = vmatprep.subr.mxu0 0.0
    %887 = vmatpush1.msra.mxu0 0.0
    %888 = vmatprep.subr.mxu0 0.0
    %889 = vmatpush1.msra.mxu0 0.0
    %890 = vmatprep.subr.mxu0 0.0
    %891 = vmatpush1.msra.mxu0 0.0
    %892 = vmatprep.subr.mxu0 0.0
    %893 = vmatpush1.msra.mxu0 0.0
    %894 = vmatprep.subr.mxu0 0.0
    %895 = vmatpush1.msra.mxu0 0.0
    %896 = vmatprep.subr.mxu0 0.0
    %897 = vmatpush1.msra.mxu0 0.0
    %898 = vmatprep.subr.mxu0 0.0
    %899 = vmatpush1.msra.mxu0 0.0
    %900 = vmatprep.mubr.f32.mxu0 0.0
    %901 = vmatmul.mubr.f32.gmra.mrb[0].mxu0 %v834
    %v902 = vpop.f32.mrb[0].mxu0
    %v903 = vadd.f32 0.0, %v902
    %v904 = vpop.f32.mrb[0].mxu0
    %905 = vdwg.mxu0
    %v906 = vadd.f32 %v830, %v903
    %v907 = vtanh.pop %v906
    %v909 = vrot.slane %v762, 6
    %v910 = vsel %vm161, %v909, 0
    %912 = vmatprep.subr.mxu0 0.0
    %913 = vmatpush1.msra.mxu0 %v59
    %914 = vmatprep.subr.mxu0 0.0
    %915 = vmatpush1.msra.mxu0 %v60
    %916 = vmatprep.subr.mxu0 0.0
    %917 = vmatpush1.msra.mxu0 %v61
    %918 = vmatprep.subr.mxu0 0.0
    %919 = vmatpush1.msra.mxu0 %v62
    %920 = vmatprep.subr.mxu0 0.0
    %921 = vmatpush1.msra.mxu0 0.0
    %922 = vmatprep.subr.mxu0 0.0
    %923 = vmatpush1.msra.mxu0 0.0
    %924 = vmatprep.subr.mxu0 0.0
    %925 = vmatpush1.msra.mxu0 0.0
    %926 = vmatprep.subr.mxu0 0.0
    %927 = vmatpush1.msra.mxu0 0.0
    %928 = vmatprep.subr.mxu0 0.0
    %929 = vmatpush1.msra.mxu0 0.0
    %930 = vmatprep.subr.mxu0 0.0
    %931 = vmatpush1.msra.mxu0 0.0
    %932 = vmatprep.subr.mxu0 0.0
    %933 = vmatpush1.msra.mxu0 0.0
    %934 = vmatprep.subr.mxu0 0.0
    %935 = vmatpush1.msra.mxu0 0.0
    %936 = vmatprep.subr.mxu0 0.0
    %937 = vmatpush1.msra.mxu0 0.0
    %938 = vmatprep.subr.mxu0 0.0
    %939 = vmatpush1.msra.mxu0 0.0
    %940 = vmatprep.subr.mxu0 0.0
    %941 = vmatpush1.msra.mxu0 0.0
    %942 = vmatprep.subr.mxu0 0.0
    %943 = vmatpush1.msra.mxu0 0.0
    %944 = vmatprep.subr.mxu0 0.0
    %945 = vmatpush1.msra.mxu0 0.0
    %946 = vmatprep.subr.mxu0 0.0
    %947 = vmatpush1.msra.mxu0 0.0
    %948 = vmatprep.subr.mxu0 0.0
    %949 = vmatpush1.msra.mxu0 0.0
    %950 = vmatprep.subr.mxu0 0.0
    %951 = vmatpush1.msra.mxu0 0.0
    %952 = vmatprep.subr.mxu0 0.0
    %953 = vmatpush1.msra.mxu0 0.0
    %954 = vmatprep.subr.mxu0 0.0
    %955 = vmatpush1.msra.mxu0 0.0
    %956 = vmatprep.subr.mxu0 0.0
    %957 = vmatpush1.msra.mxu0 0.0
    %958 = vmatprep.subr.mxu0 0.0
    %959 = vmatpush1.msra.mxu0 0.0
    %960 = vmatprep.subr.mxu0 0.0
    %961 = vmatpush1.msra.mxu0 0.0
    %962 = vmatprep.subr.mxu0 0.0
    %963 = vmatpush1.msra.mxu0 0.0
    %964 = vmatprep.subr.mxu0 0.0
    %965 = vmatpush1.msra.mxu0 0.0
    %966 = vmatprep.subr.mxu0 0.0
    %967 = vmatpush1.msra.mxu0 0.0
    %968 = vmatprep.subr.mxu0 0.0
    %969 = vmatpush1.msra.mxu0 0.0
    %970 = vmatprep.subr.mxu0 0.0
    %971 = vmatpush1.msra.mxu0 0.0
    %972 = vmatprep.subr.mxu0 0.0
    %973 = vmatpush1.msra.mxu0 0.0
    %974 = vmatprep.subr.mxu0 0.0
    %975 = vmatpush1.msra.mxu0 0.0
    %976 = vmatprep.mubr.f32.mxu0 0.0
    %977 = vmatmul.mubr.f32.gmra.mrb[0].mxu0 %v910
    %v978 = vpop.f32.mrb[0].mxu0
    %v979 = vadd.f32 0.0, %v978
    %v980 = vpop.f32.mrb[0].mxu0
    %981 = vdwg.mxu0
    %v982 = vadd.f32 %v155, %v979
    %v983 = vtanh.pop %v982
    %984 = vmatprep.subr.mxu0 0.0
    %985 = vmatpush1.msra.mxu0 %v55
    %986 = vmatprep.subr.mxu0 0.0
    %987 = vmatpush1.msra.mxu0 %v56
    %988 = vmatprep.subr.mxu0 0.0
    %989 = vmatpush1.msra.mxu0 %v57
    %990 = vmatprep.subr.mxu0 0.0
    %991 = vmatpush1.msra.mxu0 %v58
    %992 = vmatprep.subr.mxu0 0.0
    %993 = vmatpush1.msra.mxu0 0.0
    %994 = vmatprep.subr.mxu0 0.0
    %995 = vmatpush1.msra.mxu0 0.0
    %996 = vmatprep.subr.mxu0 0.0
    %997 = vmatpush1.msra.mxu0 0.0
    %998 = vmatprep.subr.mxu0 0.0
    %999 = vmatpush1.msra.mxu0 0.0
    %1000 = vmatprep.subr.mxu0 0.0
    %1001 = vmatpush1.msra.mxu0 0.0
    %1002 = vmatprep.subr.mxu0 0.0
    %1003 = vmatpush1.msra.mxu0 0.0
    %1004 = vmatprep.subr.mxu0 0.0
    %1005 = vmatpush1.msra.mxu0 0.0
    %1006 = vmatprep.subr.mxu0 0.0
    %1007 = vmatpush1.msra.mxu0 0.0
    %1008 = vmatprep.subr.mxu0 0.0
    %1009 = vmatpush1.msra.mxu0 0.0
    %1010 = vmatprep.subr.mxu0 0.0
    %1011 = vmatpush1.msra.mxu0 0.0
    %1012 = vmatprep.subr.mxu0 0.0
    %1013 = vmatpush1.msra.mxu0 0.0
    %1014 = vmatprep.subr.mxu0 0.0
    %1015 = vmatpush1.msra.mxu0 0.0
    %1016 = vmatprep.subr.mxu0 0.0
    %1017 = vmatpush1.msra.mxu0 0.0
    %1018 = vmatprep.subr.mxu0 0.0
    %1019 = vmatpush1.msra.mxu0 0.0
    %1020 = vmatprep.subr.mxu0 0.0
    %1021 = vmatpush1.msra.mxu0 0.0
    %1022 = vmatprep.subr.mxu0 0.0
    %1023 = vmatpush1.msra.mxu0 0.0
    %1024 = vmatprep.subr.mxu0 0.0
    %1025 = vmatpush1.msra.mxu0 0.0
    %1026 = vmatprep.subr.mxu0 0.0
    %1027 = vmatpush1.msra.mxu0 0.0
    %1028 = vmatprep.subr.mxu0 0.0
    %1029 = vmatpush1.msra.mxu0 0.0
    %1030 = vmatprep.subr.mxu0 0.0
    %1031 = vmatpush1.msra.mxu0 0.0
    %1032 = vmatprep.subr.mxu0 0.0
    %1033 = vmatpush1.msra.mxu0 0.0
    %1034 = vmatprep.subr.mxu0 0.0
    %1035 = vmatpush1.msra.mxu0 0.0
    %1036 = vmatprep.subr.mxu0 0.0
    %1037 = vmatpush1.msra.mxu0 0.0
    %1038 = vmatprep.subr.mxu0 0.0
    %1039 = vmatpush1.msra.mxu0 0.0
    %1040 = vmatprep.subr.mxu0 0.0
    %1041 = vmatpush1.msra.mxu0 0.0
    %1042 = vmatprep.subr.mxu0 0.0
    %1043 = vmatpush1.msra.mxu0 0.0
    %1044 = vmatprep.subr.mxu0 0.0
    %1045 = vmatpush1.msra.mxu0 0.0
    %1046 = vmatprep.subr.mxu0 0.0
    %1047 = vmatpush1.msra.mxu0 0.0
    %1048 = vmatprep.mubr.f32.mxu0 0.0
    %1049 = vmatmul.mubr.f32.gmra.mrb[0].mxu0 %v910
    %v1050 = vpop.f32.mrb[0].mxu0
    %v1051 = vadd.f32 %v73, %v1050
    %v1052 = vpop.f32.mrb[0].mxu0
    %1053 = vdwg.mxu0
    %v1055 = vsel %vm161, %v907, 0
    %1057 = vmatprep.subr.mxu0 0.0
    %1058 = vmatpush1.msra.mxu0 %v63
    %1059 = vmatprep.subr.mxu0 0.0
    %1060 = vmatpush1.msra.mxu0 %v64
    %1061 = vmatprep.subr.mxu0 0.0
    %1062 = vmatpush1.msra.mxu0 %v65
    %1063 = vmatprep.subr.mxu0 0.0
    %1064 = vmatpush1.msra.mxu0 %v66
    %1065 = vmatprep.subr.mxu0 0.0
    %1066 = vmatpush1.msra.mxu0 0.0
    %1067 = vmatprep.subr.mxu0 0.0
    %1068 = vmatpush1.msra.mxu0 0.0
    %1069 = vmatprep.subr.mxu0 0.0
    %1070 = vmatpush1.msra.mxu0 0.0
    %1071 = vmatprep.subr.mxu0 0.0
    %1072 = vmatpush1.msra.mxu0 0.0
    %1073 = vmatprep.subr.mxu0 0.0
    %1074 = vmatpush1.msra.mxu0 0.0
    %1075 = vmatprep.subr.mxu0 0.0
    %1076 = vmatpush1.msra.mxu0 0.0
    %1077 = vmatprep.subr.mxu0 0.0
    %1078 = vmatpush1.msra.mxu0 0.0
    %1079 = vmatprep.subr.mxu0 0.0
    %1080 = vmatpush1.msra.mxu0 0.0
    %1081 = vmatprep.subr.mxu0 0.0
    %1082 = vmatpush1.msra.mxu0 0.0
    %1083 = vmatprep.subr.mxu0 0.0
    %1084 = vmatpush1.msra.mxu0 0.0
    %1085 = vmatprep.subr.mxu0 0.0
    %1086 = vmatpush1.msra.mxu0 0.0
    %1087 = vmatprep.subr.mxu0 0.0
    %1088 = vmatpush1.msra.mxu0 0.0
    %1089 = vmatprep.subr.mxu0 0.0
    %1090 = vmatpush1.msra.mxu0 0.0
    %1091 = vmatprep.subr.mxu0 0.0
    %1092 = vmatpush1.msra.mxu0 0.0
    %1093 = vmatprep.subr.mxu0 0.0
    %1094 = vmatpush1.msra.mxu0 0.0
    %1095 = vmatprep.subr.mxu0 0.0
    %1096 = vmatpush1.msra.mxu0 0.0
    %1097 = vmatprep.subr.mxu0 0.0
    %1098 = vmatpush1.msra.mxu0 0.0
    %1099 = vmatprep.subr.mxu0 0.0
    %1100 = vmatpush1.msra.mxu0 0.0
    %1101 = vmatprep.subr.mxu0 0.0
    %1102 = vmatpush1.msra.mxu0 0.0
    %1103 = vmatprep.subr.mxu0 0.0
    %1104 = vmatpush1.msra.mxu0 0.0
    %1105 = vmatprep.subr.mxu0 0.0
    %1106 = vmatpush1.msra.mxu0 0.0
    %1107 = vmatprep.subr.mxu0 0.0
    %1108 = vmatpush1.msra.mxu0 0.0
    %1109 = vmatprep.subr.mxu0 0.0
    %1110 = vmatpush1.msra.mxu0 0.0
    %1111 = vmatprep.subr.mxu0 0.0
    %1112 = vmatpush1.msra.mxu0 0.0
    %1113 = vmatprep.subr.mxu0 0.0
    %1114 = vmatpush1.msra.mxu0 0.0
    %1115 = vmatprep.subr.mxu0 0.0
    %1116 = vmatpush1.msra.mxu0 0.0
    %1117 = vmatprep.subr.mxu0 0.0
    %1118 = vmatpush1.msra.mxu0 0.0
    %1119 = vmatprep.subr.mxu0 0.0
    %1120 = vmatpush1.msra.mxu0 0.0
    %1121 = vmatprep.mubr.f32.mxu0 0.0
    %1122 = vmatmul.mubr.f32.gmra.mrb[0].mxu0 %v1055
    %v1123 = vpop.f32.mrb[0].mxu0
    %v1124 = vadd.f32 0.0, %v1123
    %v1125 = vpop.f32.mrb[0].mxu0
    %1126 = vdwg.mxu0
    %v1127 = vadd.f32 %v1051, %v1124
    %v1128 = vtanh.pop %v1127
    %v1130 = vsel %vm161, %v983, 0
    %1132 = vmatprep.subr.mxu0 0.0
    %1133 = vmatpush1.msra.mxu0 %v59
    %1134 = vmatprep.subr.mxu0 0.0
    %1135 = vmatpush1.msra.mxu0 %v60
    %1136 = vmatprep.subr.mxu0 0.0
    %1137 = vmatpush1.msra.mxu0 %v61
    %1138 = vmatprep.subr.mxu0 0.0
    %1139 = vmatpush1.msra.mxu0 %v62
    %1140 = vmatprep.subr.mxu0 0.0
    %1141 = vmatpush1.msra.mxu0 0.0
    %1142 = vmatprep.subr.mxu0 0.0
    %1143 = vmatpush1.msra.mxu0 0.0
    %1144 = vmatprep.subr.mxu0 0.0
    %1145 = vmatpush1.msra.mxu0 0.0
    %1146 = vmatprep.subr.mxu0 0.0
    %1147 = vmatpush1.msra.mxu0 0.0
    %1148 = vmatprep.subr.mxu0 0.0
    %1149 = vmatpush1.msra.mxu0 0.0
    %1150 = vmatprep.subr.mxu0 0.0
    %1151 = vmatpush1.msra.mxu0 0.0
    %1152 = vmatprep.subr.mxu0 0.0
    %1153 = vmatpush1.msra.mxu0 0.0
    %1154 = vmatprep.subr.mxu0 0.0
    %1155 = vmatpush1.msra.mxu0 0.0
    %1156 = vmatprep.subr.mxu0 0.0
    %1157 = vmatpush1.msra.mxu0 0.0
    %1158 = vmatprep.subr.mxu0 0.0
    %1159 = vmatpush1.msra.mxu0 0.0
    %1160 = vmatprep.subr.mxu0 0.0
    %1161 = vmatpush1.msra.mxu0 0.0
    %1162 = vmatprep.subr.mxu0 0.0
    %1163 = vmatpush1.msra.mxu0 0.0
    %1164 = vmatprep.subr.mxu0 0.0
    %1165 = vmatpush1.msra.mxu0 0.0
    %1166 = vmatprep.subr.mxu0 0.0
    %1167 = vmatpush1.msra.mxu0 0.0
    %1168 = vmatprep.subr.mxu0 0.0
    %1169 = vmatpush1.msra.mxu0 0.0
    %1170 = vmatprep.subr.mxu0 0.0
    %1171 = vmatpush1.msra.mxu0 0.0
    %1172 = vmatprep.subr.mxu0 0.0
    %1173 = vmatpush1.msra.mxu0 0.0
    %1174 = vmatprep.subr.mxu0 0.0
    %1175 = vmatpush1.msra.mxu0 0.0
    %1176 = vmatprep.subr.mxu0 0.0
    %1177 = vmatpush1.msra.mxu0 0.0
    %1178 = vmatprep.subr.mxu0 0.0
    %1179 = vmatpush1.msra.mxu0 0.0
    %1180 = vmatprep.subr.mxu0 0.0
    %1181 = vmatpush1.msra.mxu0 0.0
    %1182 = vmatprep.subr.mxu0 0.0
    %1183 = vmatpush1.msra.mxu0 0.0
    %1184 = vmatprep.subr.mxu0 0.0
    %1185 = vmatpush1.msra.mxu0 0.0
    %1186 = vmatprep.subr.mxu0 0.0
    %1187 = vmatpush1.msra.mxu0 0.0
    %1188 = vmatprep.subr.mxu0 0.0
    %1189 = vmatpush1.msra.mxu0 0.0
    %1190 = vmatprep.subr.mxu0 0.0
    %1191 = vmatpush1.msra.mxu0 0.0
    %1192 = vmatprep.subr.mxu0 0.0
    %1193 = vmatpush1.msra.mxu0 0.0
    %1194 = vmatprep.subr.mxu0 0.0
    %1195 = vmatpush1.msra.mxu0 0.0
    %1196 = vmatprep.mubr.f32.mxu0 0.0
    %1197 = vmatmul.mubr.f32.gmra.mrb[0].mxu0 %v1130
    %v1198 = vpop.f32.mrb[0].mxu0
    %v1199 = vadd.f32 0.0, %v1198
    %v1200 = vpop.f32.mrb[0].mxu0
    %1201 = vdwg.mxu0
    %v1203 = vrot.slane %v1199, 6
    %v1205 = vadd.f32 %v155, %v1203
    %v1206 = vtanh.pop %v1205
    %1207 = vmatprep.subr.mxu0 0.0
    %1208 = vmatpush1.msra.mxu0 %v55
    %1209 = vmatprep.subr.mxu0 0.0
    %1210 = vmatpush1.msra.mxu0 %v56
    %1211 = vmatprep.subr.mxu0 0.0
    %1212 = vmatpush1.msra.mxu0 %v57
    %1213 = vmatprep.subr.mxu0 0.0
    %1214 = vmatpush1.msra.mxu0 %v58
    %1215 = vmatprep.subr.mxu0 0.0
    %1216 = vmatpush1.msra.mxu0 0.0
    %1217 = vmatprep.subr.mxu0 0.0
    %1218 = vmatpush1.msra.mxu0 0.0
    %1219 = vmatprep.subr.mxu0 0.0
    %1220 = vmatpush1.msra.mxu0 0.0
    %1221 = vmatprep.subr.mxu0 0.0
    %1222 = vmatpush1.msra.mxu0 0.0
    %1223 = vmatprep.subr.mxu0 0.0
    %1224 = vmatpush1.msra.mxu0 0.0
    %1225 = vmatprep.subr.mxu0 0.0
    %1226 = vmatpush1.msra.mxu0 0.0
    %1227 = vmatprep.subr.mxu0 0.0
    %1228 = vmatpush1.msra.mxu0 0.0
    %1229 = vmatprep.subr.mxu0 0.0
    %1230 = vmatpush1.msra.mxu0 0.0
    %1231 = vmatprep.subr.mxu0 0.0
    %1232 = vmatpush1.msra.mxu0 0.0
    %1233 = vmatprep.subr.mxu0 0.0
    %1234 = vmatpush1.msra.mxu0 0.0
    %1235 = vmatprep.subr.mxu0 0.0
    %1236 = vmatpush1.msra.mxu0 0.0
    %1237 = vmatprep.subr.mxu0 0.0
    %1238 = vmatpush1.msra.mxu0 0.0
    %1239 = vmatprep.subr.mxu0 0.0
    %1240 = vmatpush1.msra.mxu0 0.0
    %1241 = vmatprep.subr.mxu0 0.0
    %1242 = vmatpush1.msra.mxu0 0.0
    %1243 = vmatprep.subr.mxu0 0.0
    %1244 = vmatpush1.msra.mxu0 0.0
    %1245 = vmatprep.subr.mxu0 0.0
    %1246 = vmatpush1.msra.mxu0 0.0
    %1247 = vmatprep.subr.mxu0 0.0
    %1248 = vmatpush1.msra.mxu0 0.0
    %1249 = vmatprep.subr.mxu0 0.0
    %1250 = vmatpush1.msra.mxu0 0.0
    %1251 = vmatprep.subr.mxu0 0.0
    %1252 = vmatpush1.msra.mxu0 0.0
    %1253 = vmatprep.subr.mxu0 0.0
    %1254 = vmatpush1.msra.mxu0 0.0
    %1255 = vmatprep.subr.mxu0 0.0
    %1256 = vmatpush1.msra.mxu0 0.0
    %1257 = vmatprep.subr.mxu0 0.0
    %1258 = vmatpush1.msra.mxu0 0.0
    %1259 = vmatprep.subr.mxu0 0.0
    %1260 = vmatpush1.msra.mxu0 0.0
    %1261 = vmatprep.subr.mxu0 0.0
    %1262 = vmatpush1.msra.mxu0 0.0
    %1263 = vmatprep.subr.mxu0 0.0
    %1264 = vmatpush1.msra.mxu0 0.0
    %1265 = vmatprep.subr.mxu0 0.0
    %1266 = vmatpush1.msra.mxu0 0.0
    %1267 = vmatprep.subr.mxu0 0.0
    %1268 = vmatpush1.msra.mxu0 0.0
    %1269 = vmatprep.subr.mxu0 0.0
    %1270 = vmatpush1.msra.mxu0 0.0
    %1271 = vmatprep.mubr.f32.mxu0 0.0
    %1272 = vmatmul.mubr.f32.gmra.mrb[0].mxu0 %v1130
    %v1273 = vpop.f32.mrb[0].mxu0
    %v1274 = vadd.f32 %v73, %v1273
    %v1275 = vpop.f32.mrb[0].mxu0
    %1276 = vdwg.mxu0
    %v1278 = vsel %vm161, %v1128, 0
    %1280 = vmatprep.subr.mxu0 0.0
    %1281 = vmatpush1.msra.mxu0 %v63
    %1282 = vmatprep.subr.mxu0 0.0
    %1283 = vmatpush1.msra.mxu0 %v64
    %1284 = vmatprep.subr.mxu0 0.0
    %1285 = vmatpush1.msra.mxu0 %v65
    %1286 = vmatprep.subr.mxu0 0.0
    %1287 = vmatpush1.msra.mxu0 %v66
    %1288 = vmatprep.subr.mxu0 0.0
    %1289 = vmatpush1.msra.mxu0 0.0
    %1290 = vmatprep.subr.mxu0 0.0
    %1291 = vmatpush1.msra.mxu0 0.0
    %1292 = vmatprep.subr.mxu0 0.0
    %1293 = vmatpush1.msra.mxu0 0.0
    %1294 = vmatprep.subr.mxu0 0.0
    %1295 = vmatpush1.msra.mxu0 0.0
    %1296 = vmatprep.subr.mxu0 0.0
    %1297 = vmatpush1.msra.mxu0 0.0
    %1298 = vmatprep.subr.mxu0 0.0
    %1299 = vmatpush1.msra.mxu0 0.0
    %1300 = vmatprep.subr.mxu0 0.0
    %1301 = vmatpush1.msra.mxu0 0.0
    %1302 = vmatprep.subr.mxu0 0.0
    %1303 = vmatpush1.msra.mxu0 0.0
    %1304 = vmatprep.subr.mxu0 0.0
    %1305 = vmatpush1.msra.mxu0 0.0
    %1306 = vmatprep.subr.mxu0 0.0
    %1307 = vmatpush1.msra.mxu0 0.0
    %1308 = vmatprep.subr.mxu0 0.0
    %1309 = vmatpush1.msra.mxu0 0.0
    %1310 = vmatprep.subr.mxu0 0.0
    %1311 = vmatpush1.msra.mxu0 0.0
    %1312 = vmatprep.subr.mxu0 0.0
    %1313 = vmatpush1.msra.mxu0 0.0
    %1314 = vmatprep.subr.mxu0 0.0
    %1315 = vmatpush1.msra.mxu0 0.0
    %1316 = vmatprep.subr.mxu0 0.0
    %1317 = vmatpush1.msra.mxu0 0.0
    %1318 = vmatprep.subr.mxu0 0.0
    %1319 = vmatpush1.msra.mxu0 0.0
    %1320 = vmatprep.subr.mxu0 0.0
    %1321 = vmatpush1.msra.mxu0 0.0
    %1322 = vmatprep.subr.mxu0 0.0
    %1323 = vmatpush1.msra.mxu0 0.0
    %1324 = vmatprep.subr.mxu0 0.0
    %1325 = vmatpush1.msra.mxu0 0.0
    %1326 = vmatprep.subr.mxu0 0.0
    %1327 = vmatpush1.msra.mxu0 0.0
    %1328 = vmatprep.subr.mxu0 0.0
    %1329 = vmatpush1.msra.mxu0 0.0
    %1330 = vmatprep.subr.mxu0 0.0
    %1331 = vmatpush1.msra.mxu0 0.0
    %1332 = vmatprep.subr.mxu0 0.0
    %1333 = vmatpush1.msra.mxu0 0.0
    %1334 = vmatprep.subr.mxu0 0.0
    %1335 = vmatpush1.msra.mxu0 0.0
    %1336 = vmatprep.subr.mxu0 0.0
    %1337 = vmatpush1.msra.mxu0 0.0
    %1338 = vmatprep.subr.mxu0 0.0
    %1339 = vmatpush1.msra.mxu0 0.0
    %1340 = vmatprep.subr.mxu0 0.0
    %1341 = vmatpush1.msra.mxu0 0.0
    %1342 = vmatprep.subr.mxu0 0.0
    %1343 = vmatpush1.msra.mxu0 0.0
    %1344 = vmatprep.mubr.f32.mxu0 0.0
    %1345 = vmatmul.mubr.f32.gmra.mrb[0].mxu0 %v1278
    %v1346 = vpop.f32.mrb[0].mxu0
    %v1347 = vadd.f32 0.0, %v1346
    %v1348 = vpop.f32.mrb[0].mxu0
    %1349 = vdwg.mxu0
    %v1350 = vadd.f32 %v1274, %v1347
    %v1351 = vtanh.pop %v1350
    %v1353 = vrot.slane %v1206, 2
    %v1354 = vsel %vm161, %v1353, 0
    %1356 = vmatprep.subr.mxu0 0.0
    %1357 = vmatpush1.msra.mxu0 %v59
    %1358 = vmatprep.subr.mxu0 0.0
    %1359 = vmatpush1.msra.mxu0 %v60
    %1360 = vmatprep.subr.mxu0 0.0
    %1361 = vmatpush1.msra.mxu0 %v61
    %1362 = vmatprep.subr.mxu0 0.0
    %1363 = vmatpush1.msra.mxu0 %v62
    %1364 = vmatprep.subr.mxu0 0.0
    %1365 = vmatpush1.msra.mxu0 0.0
    %1366 = vmatprep.subr.mxu0 0.0
    %1367 = vmatpush1.msra.mxu0 0.0
    %1368 = vmatprep.subr.mxu0 0.0
    %1369 = vmatpush1.msra.mxu0 0.0
    %1370 = vmatprep.subr.mxu0 0.0
    %1371 = vmatpush1.msra.mxu0 0.0
    %1372 = vmatprep.subr.mxu0 0.0
    %1373 = vmatpush1.msra.mxu0 0.0
    %1374 = vmatprep.subr.mxu0 0.0
    %1375 = vmatpush1.msra.mxu0 0.0
    %1376 = vmatprep.subr.mxu0 0.0
    %1377 = vmatpush1.msra.mxu0 0.0
    %1378 = vmatprep.subr.mxu0 0.0
    %1379 = vmatpush1.msra.mxu0 0.0
    %1380 = vmatprep.subr.mxu0 0.0
    %1381 = vmatpush1.msra.mxu0 0.0
    %1382 = vmatprep.subr.mxu0 0.0
    %1383 = vmatpush1.msra.mxu0 0.0
    %1384 = vmatprep.subr.mxu0 0.0
    %1385 = vmatpush1.msra.mxu0 0.0
    %1386 = vmatprep.subr.mxu0 0.0
    %1387 = vmatpush1.msra.mxu0 0.0
    %1388 = vmatprep.subr.mxu0 0.0
    %1389 = vmatpush1.msra.mxu0 0.0
    %1390 = vmatprep.subr.mxu0 0.0
    %1391 = vmatpush1.msra.mxu0 0.0
    %1392 = vmatprep.subr.mxu0 0.0
    %1393 = vmatpush1.msra.mxu0 0.0
    %1394 = vmatprep.subr.mxu0 0.0
    %1395 = vmatpush1.msra.mxu0 0.0
    %1396 = vmatprep.subr.mxu0 0.0
    %1397 = vmatpush1.msra.mxu0 0.0
    %1398 = vmatprep.subr.mxu0 0.0
    %1399 = vmatpush1.msra.mxu0 0.0
    %1400 = vmatprep.subr.mxu0 0.0
    %1401 = vmatpush1.msra.mxu0 0.0
    %1402 = vmatprep.subr.mxu0 0.0
    %1403 = vmatpush1.msra.mxu0 0.0
    %1404 = vmatprep.subr.mxu0 0.0
    %1405 = vmatpush1.msra.mxu0 0.0
    %1406 = vmatprep.subr.mxu0 0.0
    %1407 = vmatpush1.msra.mxu0 0.0
    %1408 = vmatprep.subr.mxu0 0.0
    %1409 = vmatpush1.msra.mxu0 0.0
    %1410 = vmatprep.subr.mxu0 0.0
    %1411 = vmatpush1.msra.mxu0 0.0
    %1412 = vmatprep.subr.mxu0 0.0
    %1413 = vmatpush1.msra.mxu0 0.0
    %1414 = vmatprep.subr.mxu0 0.0
    %1415 = vmatpush1.msra.mxu0 0.0
    %1416 = vmatprep.subr.mxu0 0.0
    %1417 = vmatpush1.msra.mxu0 0.0
    %1418 = vmatprep.subr.mxu0 0.0
    %1419 = vmatpush1.msra.mxu0 0.0
    %1420 = vmatprep.mubr.f32.mxu0 0.0
    %1421 = vmatmul.mubr.f32.gmra.mrb[0].mxu0 %v1354
    %v1422 = vpop.f32.mrb[0].mxu0
    %v1423 = vadd.f32 0.0, %v1422
    %v1424 = vpop.f32.mrb[0].mxu0
    %1425 = vdwg.mxu0
    %v1427 = vrot.slane %v1423, 4
    %v1429 = vadd.f32 %v155, %v1427
    %v1430 = vtanh.pop %v1429
    %1431 = vmatprep.subr.mxu0 0.0
    %1432 = vmatpush1.msra.mxu0 %v55
    %1433 = vmatprep.subr.mxu0 0.0
    %1434 = vmatpush1.msra.mxu0 %v56
    %1435 = vmatprep.subr.mxu0 0.0
    %1436 = vmatpush1.msra.mxu0 %v57
    %1437 = vmatprep.subr.mxu0 0.0
    %1438 = vmatpush1.msra.mxu0 %v58
    %1439 = vmatprep.subr.mxu0 0.0
    %1440 = vmatpush1.msra.mxu0 0.0
    %1441 = vmatprep.subr.mxu0 0.0
    %1442 = vmatpush1.msra.mxu0 0.0
    %1443 = vmatprep.subr.mxu0 0.0
    %1444 = vmatpush1.msra.mxu0 0.0
    %1445 = vmatprep.subr.mxu0 0.0
    %1446 = vmatpush1.msra.mxu0 0.0
    %1447 = vmatprep.subr.mxu0 0.0
    %1448 = vmatpush1.msra.mxu0 0.0
    %1449 = vmatprep.subr.mxu0 0.0
    %1450 = vmatpush1.msra.mxu0 0.0
    %1451 = vmatprep.subr.mxu0 0.0
    %1452 = vmatpush1.msra.mxu0 0.0
    %1453 = vmatprep.subr.mxu0 0.0
    %1454 = vmatpush1.msra.mxu0 0.0
    %1455 = vmatprep.subr.mxu0 0.0
    %1456 = vmatpush1.msra.mxu0 0.0
    %1457 = vmatprep.subr.mxu0 0.0
    %1458 = vmatpush1.msra.mxu0 0.0
    %1459 = vmatprep.subr.mxu0 0.0
    %1460 = vmatpush1.msra.mxu0 0.0
    %1461 = vmatprep.subr.mxu0 0.0
    %1462 = vmatpush1.msra.mxu0 0.0
    %1463 = vmatprep.subr.mxu0 0.0
    %1464 = vmatpush1.msra.mxu0 0.0
    %1465 = vmatprep.subr.mxu0 0.0
    %1466 = vmatpush1.msra.mxu0 0.0
    %1467 = vmatprep.subr.mxu0 0.0
    %1468 = vmatpush1.msra.mxu0 0.0
    %1469 = vmatprep.subr.mxu0 0.0
    %1470 = vmatpush1.msra.mxu0 0.0
    %1471 = vmatprep.subr.mxu0 0.0
    %1472 = vmatpush1.msra.mxu0 0.0
    %1473 = vmatprep.subr.mxu0 0.0
    %1474 = vmatpush1.msra.mxu0 0.0
    %1475 = vmatprep.subr.mxu0 0.0
    %1476 = vmatpush1.msra.mxu0 0.0
    %1477 = vmatprep.subr.mxu0 0.0
    %1478 = vmatpush1.msra.mxu0 0.0
    %1479 = vmatprep.subr.mxu0 0.0
    %1480 = vmatpush1.msra.mxu0 0.0
    %1481 = vmatprep.subr.mxu0 0.0
    %1482 = vmatpush1.msra.mxu0 0.0
    %1483 = vmatprep.subr.mxu0 0.0
    %1484 = vmatpush1.msra.mxu0 0.0
    %1485 = vmatprep.subr.mxu0 0.0
    %1486 = vmatpush1.msra.mxu0 0.0
    %1487 = vmatprep.subr.mxu0 0.0
    %1488 = vmatpush1.msra.mxu0 0.0
    %1489 = vmatprep.subr.mxu0 0.0
    %1490 = vmatpush1.msra.mxu0 0.0
    %1491 = vmatprep.subr.mxu0 0.0
    %1492 = vmatpush1.msra.mxu0 0.0
    %1493 = vmatprep.subr.mxu0 0.0
    %1494 = vmatpush1.msra.mxu0 0.0
    %1495 = vmatprep.mubr.f32.mxu0 0.0
    %1496 = vmatmul.mubr.f32.gmra.mrb[0].mxu0 %v1354
    %v1497 = vpop.f32.mrb[0].mxu0
    %v1498 = vadd.f32 %v73, %v1497
    %v1499 = vpop.f32.mrb[0].mxu0
    %1500 = vdwg.mxu0
    %v1502 = vsel %vm161, %v1351, 0
    %1504 = vmatprep.subr.mxu0 0.0
    %1505 = vmatpush1.msra.mxu0 %v63
    %1506 = vmatprep.subr.mxu0 0.0
    %1507 = vmatpush1.msra.mxu0 %v64
    %1508 = vmatprep.subr.mxu0 0.0
    %1509 = vmatpush1.msra.mxu0 %v65
    %1510 = vmatprep.subr.mxu0 0.0
    %1511 = vmatpush1.msra.mxu0 %v66
    %1512 = vmatprep.subr.mxu0 0.0
    %1513 = vmatpush1.msra.mxu0 0.0
    %1514 = vmatprep.subr.mxu0 0.0
    %1515 = vmatpush1.msra.mxu0 0.0
    %1516 = vmatprep.subr.mxu0 0.0
    %1517 = vmatpush1.msra.mxu0 0.0
    %1518 = vmatprep.subr.mxu0 0.0
    %1519 = vmatpush1.msra.mxu0 0.0
    %1520 = vmatprep.subr.mxu0 0.0
    %1521 = vmatpush1.msra.mxu0 0.0
    %1522 = vmatprep.subr.mxu0 0.0
    %1523 = vmatpush1.msra.mxu0 0.0
    %1524 = vmatprep.subr.mxu0 0.0
    %1525 = vmatpush1.msra.mxu0 0.0
    %1526 = vmatprep.subr.mxu0 0.0
    %1527 = vmatpush1.msra.mxu0 0.0
    %1528 = vmatprep.subr.mxu0 0.0
    %1529 = vmatpush1.msra.mxu0 0.0
    %1530 = vmatprep.subr.mxu0 0.0
    %1531 = vmatpush1.msra.mxu0 0.0
    %1532 = vmatprep.subr.mxu0 0.0
    %1533 = vmatpush1.msra.mxu0 0.0
    %1534 = vmatprep.subr.mxu0 0.0
    %1535 = vmatpush1.msra.mxu0 0.0
    %1536 = vmatprep.subr.mxu0 0.0
    %1537 = vmatpush1.msra.mxu0 0.0
    %1538 = vmatprep.subr.mxu0 0.0
    %1539 = vmatpush1.msra.mxu0 0.0
    %1540 = vmatprep.subr.mxu0 0.0
    %1541 = vmatpush1.msra.mxu0 0.0
    %1542 = vmatprep.subr.mxu0 0.0
    %1543 = vmatpush1.msra.mxu0 0.0
    %1544 = vmatprep.subr.mxu0 0.0
    %1545 = vmatpush1.msra.mxu0 0.0
    %1546 = vmatprep.subr.mxu0 0.0
    %1547 = vmatpush1.msra.mxu0 0.0
    %1548 = vmatprep.subr.mxu0 0.0
    %1549 = vmatpush1.msra.mxu0 0.0
    %1550 = vmatprep.subr.mxu0 0.0
    %1551 = vmatpush1.msra.mxu0 0.0
    %1552 = vmatprep.subr.mxu0 0.0
    %1553 = vmatpush1.msra.mxu0 0.0
    %1554 = vmatprep.subr.mxu0 0.0
    %1555 = vmatpush1.msra.mxu0 0.0
    %1556 = vmatprep.subr.mxu0 0.0
    %1557 = vmatpush1.msra.mxu0 0.0
    %1558 = vmatprep.subr.mxu0 0.0
    %1559 = vmatpush1.msra.mxu0 0.0
    %1560 = vmatprep.subr.mxu0 0.0
    %1561 = vmatpush1.msra.mxu0 0.0
    %1562 = vmatprep.subr.mxu0 0.0
    %1563 = vmatpush1.msra.mxu0 0.0
    %1564 = vmatprep.subr.mxu0 0.0
    %1565 = vmatpush1.msra.mxu0 0.0
    %1566 = vmatprep.subr.mxu0 0.0
    %1567 = vmatpush1.msra.mxu0 0.0
    %1568 = vmatprep.mubr.f32.mxu0 0.0
    %1569 = vmatmul.mubr.f32.gmra.mrb[0].mxu0 %v1502
    %v1570 = vpop.f32.mrb[0].mxu0
    %v1571 = vadd.f32 0.0, %v1570
    %v1572 = vpop.f32.mrb[0].mxu0
    %1573 = vdwg.mxu0
    %v1574 = vadd.f32 %v1498, %v1571
    %v1575 = vtanh.pop %v1574
    %v1577 = vrot.slane %v1430, 4
    %v1578 = vsel %vm161, %v1577, 0
    %1580 = vmatprep.subr.mxu0 0.0
    %1581 = vmatpush1.msra.mxu0 %v59
    %1582 = vmatprep.subr.mxu0 0.0
    %1583 = vmatpush1.msra.mxu0 %v60
    %1584 = vmatprep.subr.mxu0 0.0
    %1585 = vmatpush1.msra.mxu0 %v61
    %1586 = vmatprep.subr.mxu0 0.0
    %1587 = vmatpush1.msra.mxu0 %v62
    %1588 = vmatprep.subr.mxu0 0.0
    %1589 = vmatpush1.msra.mxu0 0.0
    %1590 = vmatprep.subr.mxu0 0.0
    %1591 = vmatpush1.msra.mxu0 0.0
    %1592 = vmatprep.subr.mxu0 0.0
    %1593 = vmatpush1.msra.mxu0 0.0
    %1594 = vmatprep.subr.mxu0 0.0
    %1595 = vmatpush1.msra.mxu0 0.0
    %1596 = vmatprep.subr.mxu0 0.0
    %1597 = vmatpush1.msra.mxu0 0.0
    %1598 = vmatprep.subr.mxu0 0.0
    %1599 = vmatpush1.msra.mxu0 0.0
    %1600 = vmatprep.subr.mxu0 0.0
    %1601 = vmatpush1.msra.mxu0 0.0
    %1602 = vmatprep.subr.mxu0 0.0
    %1603 = vmatpush1.msra.mxu0 0.0
    %1604 = vmatprep.subr.mxu0 0.0
    %1605 = vmatpush1.msra.mxu0 0.0
    %1606 = vmatprep.subr.mxu0 0.0
    %1607 = vmatpush1.msra.mxu0 0.0
    %1608 = vmatprep.subr.mxu0 0.0
    %1609 = vmatpush1.msra.mxu0 0.0
    %1610 = vmatprep.subr.mxu0 0.0
    %1611 = vmatpush1.msra.mxu0 0.0
    %1612 = vmatprep.subr.mxu0 0.0
    %1613 = vmatpush1.msra.mxu0 0.0
    %1614 = vmatprep.subr.mxu0 0.0
    %1615 = vmatpush1.msra.mxu0 0.0
    %1616 = vmatprep.subr.mxu0 0.0
    %1617 = vmatpush1.msra.mxu0 0.0
    %1618 = vmatprep.subr.mxu0 0.0
    %1619 = vmatpush1.msra.mxu0 0.0
    %1620 = vmatprep.subr.mxu0 0.0
    %1621 = vmatpush1.msra.mxu0 0.0
    %1622 = vmatprep.subr.mxu0 0.0
    %1623 = vmatpush1.msra.mxu0 0.0
    %1624 = vmatprep.subr.mxu0 0.0
    %1625 = vmatpush1.msra.mxu0 0.0
    %1626 = vmatprep.subr.mxu0 0.0
    %1627 = vmatpush1.msra.mxu0 0.0
    %1628 = vmatprep.subr.mxu0 0.0
    %1629 = vmatpush1.msra.mxu0 0.0
    %1630 = vmatprep.subr.mxu0 0.0
    %1631 = vmatpush1.msra.mxu0 0.0
    %1632 = vmatprep.subr.mxu0 0.0
    %1633 = vmatpush1.msra.mxu0 0.0
    %1634 = vmatprep.subr.mxu0 0.0
    %1635 = vmatpush1.msra.mxu0 0.0
    %1636 = vmatprep.subr.mxu0 0.0
    %1637 = vmatpush1.msra.mxu0 0.0
    %1638 = vmatprep.subr.mxu0 0.0
    %1639 = vmatpush1.msra.mxu0 0.0
    %1640 = vmatprep.subr.mxu0 0.0
    %1641 = vmatpush1.msra.mxu0 0.0
    %1642 = vmatprep.subr.mxu0 0.0
    %1643 = vmatpush1.msra.mxu0 0.0
    %1644 = vmatprep.mubr.f32.mxu0 0.0
    %1645 = vmatmul.mubr.f32.gmra.mrb[0].mxu0 %v1578
    %v1646 = vpop.f32.mrb[0].mxu0
    %v1647 = vadd.f32 0.0, %v1646
    %v1648 = vpop.f32.mrb[0].mxu0
    %1649 = vdwg.mxu0
    %v1651 = vrot.slane %v1647, 2
    %v1653 = vadd.f32 %v155, %v1651
    %v1654 = vtanh.pop %v1653
    %1655 = vmatprep.subr.mxu0 0.0
    %1656 = vmatpush1.msra.mxu0 %v55
    %1657 = vmatprep.subr.mxu0 0.0
    %1658 = vmatpush1.msra.mxu0 %v56
    %1659 = vmatprep.subr.mxu0 0.0
    %1660 = vmatpush1.msra.mxu0 %v57
    %1661 = vmatprep.subr.mxu0 0.0
    %1662 = vmatpush1.msra.mxu0 %v58
    %1663 = vmatprep.subr.mxu0 0.0
    %1664 = vmatpush1.msra.mxu0 0.0
    %1665 = vmatprep.subr.mxu0 0.0
    %1666 = vmatpush1.msra.mxu0 0.0
    %1667 = vmatprep.subr.mxu0 0.0
    %1668 = vmatpush1.msra.mxu0 0.0
    %1669 = vmatprep.subr.mxu0 0.0
    %1670 = vmatpush1.msra.mxu0 0.0
    %1671 = vmatprep.subr.mxu0 0.0
    %1672 = vmatpush1.msra.mxu0 0.0
    %1673 = vmatprep.subr.mxu0 0.0
    %1674 = vmatpush1.msra.mxu0 0.0
    %1675 = vmatprep.subr.mxu0 0.0
    %1676 = vmatpush1.msra.mxu0 0.0
    %1677 = vmatprep.subr.mxu0 0.0
    %1678 = vmatpush1.msra.mxu0 0.0
    %1679 = vmatprep.subr.mxu0 0.0
    %1680 = vmatpush1.msra.mxu0 0.0
    %1681 = vmatprep.subr.mxu0 0.0
    %1682 = vmatpush1.msra.mxu0 0.0
    %1683 = vmatprep.subr.mxu0 0.0
    %1684 = vmatpush1.msra.mxu0 0.0
    %1685 = vmatprep.subr.mxu0 0.0
    %1686 = vmatpush1.msra.mxu0 0.0
    %1687 = vmatprep.subr.mxu0 0.0
    %1688 = vmatpush1.msra.mxu0 0.0
    %1689 = vmatprep.subr.mxu0 0.0
    %1690 = vmatpush1.msra.mxu0 0.0
    %1691 = vmatprep.subr.mxu0 0.0
    %1692 = vmatpush1.msra.mxu0 0.0
    %1693 = vmatprep.subr.mxu0 0.0
    %1694 = vmatpush1.msra.mxu0 0.0
    %1695 = vmatprep.subr.mxu0 0.0
    %1696 = vmatpush1.msra.mxu0 0.0
    %1697 = vmatprep.subr.mxu0 0.0
    %1698 = vmatpush1.msra.mxu0 0.0
    %1699 = vmatprep.subr.mxu0 0.0
    %1700 = vmatpush1.msra.mxu0 0.0
    %1701 = vmatprep.subr.mxu0 0.0
    %1702 = vmatpush1.msra.mxu0 0.0
    %1703 = vmatprep.subr.mxu0 0.0
    %1704 = vmatpush1.msra.mxu0 0.0
    %1705 = vmatprep.subr.mxu0 0.0
    %1706 = vmatpush1.msra.mxu0 0.0
    %1707 = vmatprep.subr.mxu0 0.0
    %1708 = vmatpush1.msra.mxu0 0.0
    %1709 = vmatprep.subr.mxu0 0.0
    %1710 = vmatpush1.msra.mxu0 0.0
    %1711 = vmatprep.subr.mxu0 0.0
    %1712 = vmatpush1.msra.mxu0 0.0
    %1713 = vmatprep.subr.mxu0 0.0
    %1714 = vmatpush1.msra.mxu0 0.0
    %1715 = vmatprep.subr.mxu0 0.0
    %1716 = vmatpush1.msra.mxu0 0.0
    %1717 = vmatprep.subr.mxu0 0.0
    %1718 = vmatpush1.msra.mxu0 0.0
    %1719 = vmatprep.mubr.f32.mxu0 0.0
    %1720 = vmatmul.mubr.f32.gmra.mrb[0].mxu0 %v1578
    %v1721 = vpop.f32.mrb[0].mxu0
    %v1722 = vadd.f32 %v73, %v1721
    %v1723 = vpop.f32.mrb[0].mxu0
    %1724 = vdwg.mxu0
    %v1726 = vsel %vm161, %v1575, 0
    %1728 = vmatprep.subr.mxu0 0.0
    %1729 = vmatpush1.msra.mxu0 %v63
    %1730 = vmatprep.subr.mxu0 0.0
    %1731 = vmatpush1.msra.mxu0 %v64
    %1732 = vmatprep.subr.mxu0 0.0
    %1733 = vmatpush1.msra.mxu0 %v65
    %1734 = vmatprep.subr.mxu0 0.0
    %1735 = vmatpush1.msra.mxu0 %v66
    %1736 = vmatprep.subr.mxu0 0.0
    %1737 = vmatpush1.msra.mxu0 0.0
    %1738 = vmatprep.subr.mxu0 0.0
    %1739 = vmatpush1.msra.mxu0 0.0
    %1740 = vmatprep.subr.mxu0 0.0
    %1741 = vmatpush1.msra.mxu0 0.0
    %1742 = vmatprep.subr.mxu0 0.0
    %1743 = vmatpush1.msra.mxu0 0.0
    %1744 = vmatprep.subr.mxu0 0.0
    %1745 = vmatpush1.msra.mxu0 0.0
    %1746 = vmatprep.subr.mxu0 0.0
    %1747 = vmatpush1.msra.mxu0 0.0
    %1748 = vmatprep.subr.mxu0 0.0
    %1749 = vmatpush1.msra.mxu0 0.0
    %1750 = vmatprep.subr.mxu0 0.0
    %1751 = vmatpush1.msra.mxu0 0.0
    %1752 = vmatprep.subr.mxu0 0.0
    %1753 = vmatpush1.msra.mxu0 0.0
    %1754 = vmatprep.subr.mxu0 0.0
    %1755 = vmatpush1.msra.mxu0 0.0
    %1756 = vmatprep.subr.mxu0 0.0
    %1757 = vmatpush1.msra.mxu0 0.0
    %1758 = vmatprep.subr.mxu0 0.0
    %1759 = vmatpush1.msra.mxu0 0.0
    %1760 = vmatprep.subr.mxu0 0.0
    %1761 = vmatpush1.msra.mxu0 0.0
    %1762 = vmatprep.subr.mxu0 0.0
    %1763 = vmatpush1.msra.mxu0 0.0
    %1764 = vmatprep.subr.mxu0 0.0
    %1765 = vmatpush1.msra.mxu0 0.0
    %1766 = vmatprep.subr.mxu0 0.0
    %1767 = vmatpush1.msra.mxu0 0.0
    %1768 = vmatprep.subr.mxu0 0.0
    %1769 = vmatpush1.msra.mxu0 0.0
    %1770 = vmatprep.subr.mxu0 0.0
    %1771 = vmatpush1.msra.mxu0 0.0
    %1772 = vmatprep.subr.mxu0 0.0
    %1773 = vmatpush1.msra.mxu0 0.0
    %1774 = vmatprep.subr.mxu0 0.0
    %1775 = vmatpush1.msra.mxu0 0.0
    %1776 = vmatprep.subr.mxu0 0.0
    %1777 = vmatpush1.msra.mxu0 0.0
    %1778 = vmatprep.subr.mxu0 0.0
    %1779 = vmatpush1.msra.mxu0 0.0
    %1780 = vmatprep.subr.mxu0 0.0
    %1781 = vmatpush1.msra.mxu0 0.0
    %1782 = vmatprep.subr.mxu0 0.0
    %1783 = vmatpush1.msra.mxu0 0.0
    %1784 = vmatprep.subr.mxu0 0.0
    %1785 = vmatpush1.msra.mxu0 0.0
    %1786 = vmatprep.subr.mxu0 0.0
    %1787 = vmatpush1.msra.mxu0 0.0
    %1788 = vmatprep.subr.mxu0 0.0
    %1789 = vmatpush1.msra.mxu0 0.0
    %1790 = vmatprep.subr.mxu0 0.0
    %1791 = vmatpush1.msra.mxu0 0.0
    %1792 = vmatprep.mubr.f32.mxu0 0.0
    %1793 = vmatmul.mubr.f32.gmra.mrb[0].mxu0 %v1726
    %v1794 = vpop.f32.mrb[0].mxu0
    %v1795 = vadd.f32 0.0, %v1794
    %v1796 = vpop.f32.mrb[0].mxu0
    %1797 = vdwg.mxu0
    %v1798 = vadd.f32 %v1722, %v1795
    %v1799 = vtanh.pop %v1798
    %v1801 = vrot.slane %v1654, 6
    %v1802 = vsel %vm161, %v1801, 0
    %1804 = vmatprep.subr.mxu0 0.0
    %1805 = vmatpush1.msra.mxu0 %v55
    %1806 = vmatprep.subr.mxu0 0.0
    %1807 = vmatpush1.msra.mxu0 %v56
    %1808 = vmatprep.subr.mxu0 0.0
    %1809 = vmatpush1.msra.mxu0 %v57
    %1810 = vmatprep.subr.mxu0 0.0
    %1811 = vmatpush1.msra.mxu0 %v58
    %1812 = vmatprep.subr.mxu0 0.0
    %1813 = vmatpush1.msra.mxu0 0.0
    %1814 = vmatprep.subr.mxu0 0.0
    %1815 = vmatpush1.msra.mxu0 0.0
    %1816 = vmatprep.subr.mxu0 0.0
    %1817 = vmatpush1.msra.mxu0 0.0
    %1818 = vmatprep.subr.mxu0 0.0
    %1819 = vmatpush1.msra.mxu0 0.0
    %1820 = vmatprep.subr.mxu0 0.0
    %1821 = vmatpush1.msra.mxu0 0.0
    %1822 = vmatprep.subr.mxu0 0.0
    %1823 = vmatpush1.msra.mxu0 0.0
    %1824 = vmatprep.subr.mxu0 0.0
    %1825 = vmatpush1.msra.mxu0 0.0
    %1826 = vmatprep.subr.mxu0 0.0
    %1827 = vmatpush1.msra.mxu0 0.0
    %1828 = vmatprep.subr.mxu0 0.0
    %1829 = vmatpush1.msra.mxu0 0.0
    %1830 = vmatprep.subr.mxu0 0.0
    %1831 = vmatpush1.msra.mxu0 0.0
    %1832 = vmatprep.subr.mxu0 0.0
    %1833 = vmatpush1.msra.mxu0 0.0
    %1834 = vmatprep.subr.mxu0 0.0
    %1835 = vmatpush1.msra.mxu0 0.0
    %1836 = vmatprep.subr.mxu0 0.0
    %1837 = vmatpush1.msra.mxu0 0.0
    %1838 = vmatprep.subr.mxu0 0.0
    %1839 = vmatpush1.msra.mxu0 0.0
    %1840 = vmatprep.subr.mxu0 0.0
    %1841 = vmatpush1.msra.mxu0 0.0
    %1842 = vmatprep.subr.mxu0 0.0
    %1843 = vmatpush1.msra.mxu0 0.0
    %1844 = vmatprep.subr.mxu0 0.0
    %1845 = vmatpush1.msra.mxu0 0.0
    %1846 = vmatprep.subr.mxu0 0.0
    %1847 = vmatpush1.msra.mxu0 0.0
    %1848 = vmatprep.subr.mxu0 0.0
    %1849 = vmatpush1.msra.mxu0 0.0
    %1850 = vmatprep.subr.mxu0 0.0
    %1851 = vmatpush1.msra.mxu0 0.0
    %1852 = vmatprep.subr.mxu0 0.0
    %1853 = vmatpush1.msra.mxu0 0.0
    %1854 = vmatprep.subr.mxu0 0.0
    %1855 = vmatpush1.msra.mxu0 0.0
    %1856 = vmatprep.subr.mxu0 0.0
    %1857 = vmatpush1.msra.mxu0 0.0
    %1858 = vmatprep.subr.mxu0 0.0
    %1859 = vmatpush1.msra.mxu0 0.0
    %1860 = vmatprep.subr.mxu0 0.0
    %1861 = vmatpush1.msra.mxu0 0.0
    %1862 = vmatprep.subr.mxu0 0.0
    %1863 = vmatpush1.msra.mxu0 0.0
    %1864 = vmatprep.subr.mxu0 0.0
    %1865 = vmatpush1.msra.mxu0 0.0
    %1866 = vmatprep.subr.mxu0 0.0
    %1867 = vmatpush1.msra.mxu0 0.0
    %1868 = vmatprep.mubr.f32.mxu0 0.0
    %1869 = vmatmul.mubr.f32.gmra.mrb[0].mxu0 %v1802
    %v1870 = vpop.f32.mrb[0].mxu0
    %v1871 = vadd.f32 %v73, %v1870
    %v1872 = vpop.f32.mrb[0].mxu0
    %1873 = vdwg.mxu0
    %v1875 = vsel %vm161, %v1799, 0
    %1877 = vmatprep.subr.mxu0 0.0
    %1878 = vmatpush1.msra.mxu0 %v63
    %1879 = vmatprep.subr.mxu0 0.0
    %1880 = vmatpush1.msra.mxu0 %v64
    %1881 = vmatprep.subr.mxu0 0.0
    %1882 = vmatpush1.msra.mxu0 %v65
    %1883 = vmatprep.subr.mxu0 0.0
    %1884 = vmatpush1.msra.mxu0 %v66
    %1885 = vmatprep.subr.mxu0 0.0
    %1886 = vmatpush1.msra.mxu0 0.0
    %1887 = vmatprep.subr.mxu0 0.0
    %1888 = vmatpush1.msra.mxu0 0.0
    %1889 = vmatprep.subr.mxu0 0.0
    %1890 = vmatpush1.msra.mxu0 0.0
    %1891 = vmatprep.subr.mxu0 0.0
    %1892 = vmatpush1.msra.mxu0 0.0
    %1893 = vmatprep.subr.mxu0 0.0
    %1894 = vmatpush1.msra.mxu0 0.0
    %1895 = vmatprep.subr.mxu0 0.0
    %1896 = vmatpush1.msra.mxu0 0.0
    %1897 = vmatprep.subr.mxu0 0.0
    %1898 = vmatpush1.msra.mxu0 0.0
    %1899 = vmatprep.subr.mxu0 0.0
    %1900 = vmatpush1.msra.mxu0 0.0
    %1901 = vmatprep.subr.mxu0 0.0
    %1902 = vmatpush1.msra.mxu0 0.0
    %1903 = vmatprep.subr.mxu0 0.0
    %1904 = vmatpush1.msra.mxu0 0.0
    %1905 = vmatprep.subr.mxu0 0.0
    %1906 = vmatpush1.msra.mxu0 0.0
    %1907 = vmatprep.subr.mxu0 0.0
    %1908 = vmatpush1.msra.mxu0 0.0
    %1909 = vmatprep.subr.mxu0 0.0
    %1910 = vmatpush1.msra.mxu0 0.0
    %1911 = vmatprep.subr.mxu0 0.0
    %1912 = vmatpush1.msra.mxu0 0.0
    %1913 = vmatprep.subr.mxu0 0.0
    %1914 = vmatpush1.msra.mxu0 0.0
    %1915 = vmatprep.subr.mxu0 0.0
    %1916 = vmatpush1.msra.mxu0 0.0
    %1917 = vmatprep.subr.mxu0 0.0
    %1918 = vmatpush1.msra.mxu0 0.0
    %1919 = vmatprep.subr.mxu0 0.0
    %1920 = vmatpush1.msra.mxu0 0.0
    %1921 = vmatprep.subr.mxu0 0.0
    %1922 = vmatpush1.msra.mxu0 0.0
    %1923 = vmatprep.subr.mxu0 0.0
    %1924 = vmatpush1.msra.mxu0 0.0
    %1925 = vmatprep.subr.mxu0 0.0
    %1926 = vmatpush1.msra.mxu0 0.0
    %1927 = vmatprep.subr.mxu0 0.0
    %1928 = vmatpush1.msra.mxu0 0.0
    %1929 = vmatprep.subr.mxu0 0.0
    %1930 = vmatpush1.msra.mxu0 0.0
    %1931 = vmatprep.subr.mxu0 0.0
    %1932 = vmatpush1.msra.mxu0 0.0
    %1933 = vmatprep.subr.mxu0 0.0
    %1934 = vmatpush1.msra.mxu0 0.0
    %1935 = vmatprep.subr.mxu0 0.0
    %1936 = vmatpush1.msra.mxu0 0.0
    %1937 = vmatprep.subr.mxu0 0.0
    %1938 = vmatpush1.msra.mxu0 0.0
    %1939 = vmatprep.subr.mxu0 0.0
    %1940 = vmatpush1.msra.mxu0 0.0
    %1941 = vmatprep.mubr.f32.mxu0 0.0
    %1942 = vmatmul.mubr.f32.gmra.mrb[0].mxu0 %v1875
    %v1943 = vpop.f32.mrb[0].mxu0
    %v1944 = vadd.f32 0.0, %v1943
    %v1945 = vpop.f32.mrb[0].mxu0
    %1946 = vdwg.mxu0
    %v1947 = vadd.f32 %v1871, %v1944
    %v1948 = vtanh.pop %v1947
    %vm1949 = vcmask 261126
    %1950 = vst.msk [vmem:[#allocation4 - $0x6] sm:$0xc0] %vm1949, %v1654
    %s1951 = scalar_lea.vmem [#allocation4], 2
    %vm1952 = vcmask 254976
    %1953 = vst.msk [vmem:[%s1951] sm:$0x3] %vm1952, %v1948
    %v1954 = vld [vmem:[%s8] sm:$0xff]
    %v1955 = vld [vmem:[%s8 + $0x8] sm:$0xff]
    %v1956 = vld [vmem:[%s8 + $0x10] sm:$0xff]
    %v1957 = vld [vmem:[%s8 + $0x18] sm:$0xff]
    %v1958 = vld [vmem:[%s9] sm:$0x1]
    %v1960 = vlaneseq
    %v1961 = vshrl.u32 %v1960, 7
    %v1962 = vsub.s32 0, %v1961
    %v1963 = vrot.slane %v1958, %v1962
    %v1966 = vsel %vm161, %v1948, 0
    %1968 = vmatprep.subr.mxu0 0.0
    %1969 = vmatpush1.msra.mxu0 %v1954
    %1970 = vmatprep.subr.mxu0 0.0
    %1971 = vmatpush1.msra.mxu0 %v1955
    %1972 = vmatprep.subr.mxu0 0.0
    %1973 = vmatpush1.msra.mxu0 %v1956
    %1974 = vmatprep.subr.mxu0 0.0
    %1975 = vmatpush1.msra.mxu0 %v1957
    %1976 = vmatprep.subr.mxu0 0.0
    %1977 = vmatpush1.msra.mxu0 0.0
    %1978 = vmatprep.subr.mxu0 0.0
    %1979 = vmatpush1.msra.mxu0 0.0
    %1980 = vmatprep.subr.mxu0 0.0
    %1981 = vmatpush1.msra.mxu0 0.0
    %1982 = vmatprep.subr.mxu0 0.0
    %1983 = vmatpush1.msra.mxu0 0.0
    %1984 = vmatprep.subr.mxu0 0.0
    %1985 = vmatpush1.msra.mxu0 0.0
    %1986 = vmatprep.subr.mxu0 0.0
    %1987 = vmatpush1.msra.mxu0 0.0
    %1988 = vmatprep.subr.mxu0 0.0
    %1989 = vmatpush1.msra.mxu0 0.0
    %1990 = vmatprep.subr.mxu0 0.0
    %1991 = vmatpush1.msra.mxu0 0.0
    %1992 = vmatprep.subr.mxu0 0.0
    %1993 = vmatpush1.msra.mxu0 0.0
    %1994 = vmatprep.subr.mxu0 0.0
    %1995 = vmatpush1.msra.mxu0 0.0
    %1996 = vmatprep.subr.mxu0 0.0
    %1997 = vmatpush1.msra.mxu0 0.0
    %1998 = vmatprep.subr.mxu0 0.0
    %1999 = vmatpush1.msra.mxu0 0.0
    %2000 = vmatprep.subr.mxu0 0.0
    %2001 = vmatpush1.msra.mxu0 0.0
    %2002 = vmatprep.subr.mxu0 0.0
    %2003 = vmatpush1.msra.mxu0 0.0
    %2004 = vmatprep.subr.mxu0 0.0
    %2005 = vmatpush1.msra.mxu0 0.0
    %2006 = vmatprep.subr.mxu0 0.0
    %2007 = vmatpush1.msra.mxu0 0.0
    %2008 = vmatprep.subr.mxu0 0.0
    %2009 = vmatpush1.msra.mxu0 0.0
    %2010 = vmatprep.subr.mxu0 0.0
    %2011 = vmatpush1.msra.mxu0 0.0
    %2012 = vmatprep.subr.mxu0 0.0
    %2013 = vmatpush1.msra.mxu0 0.0
    %2014 = vmatprep.subr.mxu0 0.0
    %2015 = vmatpush1.msra.mxu0 0.0
    %2016 = vmatprep.subr.mxu0 0.0
    %2017 = vmatpush1.msra.mxu0 0.0
    %2018 = vmatprep.subr.mxu0 0.0
    %2019 = vmatpush1.msra.mxu0 0.0
    %2020 = vmatprep.subr.mxu0 0.0
    %2021 = vmatpush1.msra.mxu0 0.0
    %2022 = vmatprep.subr.mxu0 0.0
    %2023 = vmatpush1.msra.mxu0 0.0
    %2024 = vmatprep.subr.mxu0 0.0
    %2025 = vmatpush1.msra.mxu0 0.0
    %2026 = vmatprep.subr.mxu0 0.0
    %2027 = vmatpush1.msra.mxu0 0.0
    %2028 = vmatprep.subr.mxu0 0.0
    %2029 = vmatpush1.msra.mxu0 0.0
    %2030 = vmatprep.subr.mxu0 0.0
    %2031 = vmatpush1.msra.mxu0 0.0
    %2032 = vmatprep.mubr.f32.mxu0 0.0
    %2033 = vmatmul.mubr.f32.gmra.mrb[0].mxu0 %v1966
    %v2034 = vpop.f32.mrb[0].mxu0
    %v2035 = vadd.f32 %v1963, %v2034
    %v2036 = vpop.f32.mrb[0].mxu0
    %2037 = vdwg.mxu0
    %vm2038 = vcmask 123904
    %2039 = vst.msk [vmem:[#allocation2] sm:$0x3] %vm2038, %v2035
    // Predicated region
    $region42: #{clt_rnn_forward.1} parent=1 // pred_check
      _
    $region43: #{clt_rnn_forward.1} parent=1 // pred_check_branch
      %2041 = sbr.rel (0) target = $region45
    $region44: #{clt_rnn_forward.1} parent=1 // pred_region
      %s2043 = ssub.s32 32, 32
      %2044 = vsyncadd [#allocation3], %s2043
      %s2046 = sshll.u32 [#allocation2], 4
      %s2047 = int_to_ptr.vmem [resolvable:$true] %s2046
      %2049 = dma.vmem_to_hbm [thread:$0]  %s2047, 32, %s10, [#allocation3]
    $region45: #{clt_rnn_forward.1} parent=1 // pred_fallthru
      _
    // Predicated region
    $region46: #{clt_rnn_forward.1} parent=1 // pred_check
      _
    $region47: #{clt_rnn_forward.1} parent=1 // pred_check_branch
      %2051 = sbr.rel (0) target = $region49
    $region48: #{clt_rnn_forward.1} parent=1 // pred_region
      %s2053 = ssub.s32 64, 64
      %2054 = vsyncadd [#allocation5], %s2053
      %s2055 = sshll.u32 [#allocation4], 4
      %s2056 = int_to_ptr.vmem [resolvable:$true] %s2055
      %2061 = dma.vmem_to_hbm [thread:$0]  %s2056, 64, %s11, [#allocation5], 32, 32, 2
    $region49: #{clt_rnn_forward.1} parent=1 // pred_fallthru
      _
    // Predicated region
    $region50: #{clt_rnn_forward.1} parent=1 // pred_check
      _
    $region51: #{clt_rnn_forward.1} parent=1 // pred_check_branch
      %2063 = sbr.rel (0) target = $region53
    $region52: #{clt_rnn_forward.1} parent=1 // pred_region
      %2064 = dma.done [#allocation3], 32
    $region53: #{clt_rnn_forward.1} parent=1 // pred_fallthru
      _
    // Predicated region
    $region54: #{clt_rnn_forward.1} parent=1 // pred_check
      _
    $region55: #{clt_rnn_forward.1} parent=1 // pred_check_branch
      %2066 = sbr.rel (0) target = $region57
    $region56: #{clt_rnn_forward.1} parent=1 // pred_region
      %2067 = dma.done [#allocation5], 64
    $region57: #{clt_rnn_forward.1} parent=1 // pred_fallthru
      _
    %2068 = vsyncpa [#allocation3], 1
    %2069 = vsyncpa [#allocation5], 1

</llo_original>
